<compile_context>
chip_gen: v7x
topology: tpu7x:2x2x1
jax: 0.10.0
libtpu: 0.0.40
codegen_flags: <defaults>
</compile_context>

<pallas_src>
import jax
import jax.numpy as jnp
from jax.experimental import pallas as pl
from jax.experimental.pallas import tpu as pltpu


# ----------------------------------------------------------------------------
# Fused kernel: whole DropGIN forward on VMEM-resident data.
# Refs: A_big, x_pad, P_big, W1 stack, W2 stack, bias stack, Wfc stack, b_sum, out
# ----------------------------------------------------------------------------
def make_dropgin_kernel(num_layers):
    def kernel(a_ref, x_ref, p_ref, w1_ref, w2_ref, b_ref, wfc_ref, bsum_ref, o_ref):
        a = a_ref[...]            # (R*N, R*N) bf16 block-diag (A + I) over runs (eps = 0)
        p = p_ref[...]            # (G, R*N)   bf16 (1/R) * pooling matrix, tiled over runs
        b_all = b_ref[...]        # (L, 2, D)  f32 biases with BN folded in

        h = x_ref[...]            # (R*N, D) bf16 node-dropped features (K zero-padded)

        # Readout, pool-first:  out = sum_i (P_big @ h_i) @ Wfc_i  (+ summed fc biases)
        pooled = jnp.dot(p, h, preferred_element_type=jnp.float32)              # (G, D)
        out = jnp.dot(pooled.astype(jnp.bfloat16), wfc_ref[0],
                      preferred_element_type=jnp.float32)                       # (G, C)

        for i in range(num_layers):
            w1 = w1_ref[i]        # (D, D) bf16, inner BN folded (layer-0 zero-padded on K)
            w2 = w2_ref[i]        # (D, D) bf16, outer BN folded
            b1 = b_all[i, 0:1, :]  # (1, D) f32
            b2 = b_all[i, 1:2, :]  # (1, D) f32

            # GIN aggregation (self-loop already inside a): f32 accumulate
            agg = jnp.dot(a, h, preferred_element_type=jnp.float32)             # (R*N, D)
            # Lin1 + folded BN1 + ReLU   (bias / ReLU kept in f32)
            h1 = jnp.maximum(
                jnp.dot(agg.astype(jnp.bfloat16), w1,
                        preferred_element_type=jnp.float32) + b1, 0.0)
            # Lin2 + folded outer BN + ReLU
            h2 = jnp.maximum(
                jnp.dot(h1.astype(jnp.bfloat16), w2,
                        preferred_element_type=jnp.float32) + b2, 0.0)
            h = h2.astype(jnp.bfloat16)                                          # next layer input

            pooled = jnp.dot(p, h, preferred_element_type=jnp.float32)           # (G, D)
            out = out + jnp.dot(pooled.astype(jnp.bfloat16), wfc_ref[i + 1],
                                preferred_element_type=jnp.float32)

        out = out + bsum_ref[...]

        # log_softmax over classes (f32 epilogue)
        m = jnp.max(out, axis=-1, keepdims=True)
        s = out - m
        o_ref[...] = s - jnp.log(jnp.sum(jnp.exp(s), axis=-1, keepdims=True))

    return kernel


def dropgin_forward(a_big, x_pad, p_big, w1_stack, w2_stack, b_stack, wfc_stack, b_sum):
    num_layers = w1_stack.shape[0]
    G = p_big.shape[0]
    C = b_sum.shape[-1]
    vmem = pl.BlockSpec(memory_space=pltpu.MemorySpace.VMEM)
    args = (a_big, x_pad, p_big, w1_stack, w2_stack, b_stack, wfc_stack, b_sum)
    return pl.pallas_call(
        make_dropgin_kernel(num_layers),
        out_shape=jax.ShapeDtypeStruct((G, C), jnp.float32),
        in_specs=[vmem] * len(args),
        out_specs=vmem,
    )(*args)


# ----------------------------------------------------------------------------
# Main: synthetic graph batch + deterministic parameters, run forward, check vs. pure JAX.
# ----------------------------------------------------------------------------
if __name__ == "__main__":
    N_PER_G, G = 16, 2            # 2 graphs, 16 nodes each
    N = N_PER_G * G               # total nodes
    F_IN, DIM, C = 16, 32, 4      # num_features, num_hidden, num_classes
    R = 4                         # num_runs  -> R*N = 128 rows (full MXU height on v5e)
    P_DROP = 0.1                  # node-drop probability p
    NUM_LAYERS = 4

    key = jax.random.PRNGKey(0)
    keys = jax.random.split(key, 64)
    ki = iter(keys)

    # --- data (data.x, data.edge_index, data.batch) ---
    x = jax.random.normal(next(ki), (N, F_IN), jnp.float32)
    src, dst = [], []
    for g in range(G):            # ring graph per component, undirected
        base = g * N_PER_G
        for i in range(N_PER_G):
            j = (i + 1) % N_PER_G
            src += [base + i, base + j]
            dst += [base + j, base + i]
    edge_index = jnp.array([src, dst], dtype=jnp.int32)          # (2, E)
    batch = jnp.repeat(jnp.arange(G, dtype=jnp.int32), N_PER_G)  # (N,)

    # dense adjacency A[dst, src] = 1  (GIN sums source features into targets)
    A = jnp.zeros((N, N), jnp.float32).at[edge_index[1], edge_index[0]].add(1.0)
    A_hat = A + jnp.eye(N, dtype=jnp.float32)                    # eps = 0 self-loop folded in
    A_big = jnp.kron(jnp.eye(R, dtype=jnp.float32), A_hat)       # (R*N, R*N) block-diag over runs

    # pooling matrix P[g, n] = 1 iff batch[n] == g ; fold mean-over-runs -> (G, R*N)
    P = (batch[None, :] == jnp.arange(G)[:, None]).astype(jnp.float32)
    P_big = jnp.tile(P, (1, R)) / float(R)

    # --- deterministic synthetic parameters ---
    def linear(k, din, dout):
        kw, kb = jax.random.split(k)
        bound = 1.0 / (din ** 0.5)
        w = jax.random.uniform(kw, (din, dout), jnp.float32, -bound, bound)
        b = jax.random.uniform(kb, (1, dout), jnp.float32, -bound, bound)
        return w, b

    # BatchNorm1d in eval mode with default init: scale = 1/sqrt(var+eps), shift = 0
    bn_scale = jnp.full((1, DIM), 1.0 / jnp.sqrt(1.0 + 1e-5), jnp.float32)
    bn_shift = jnp.zeros((1, DIM), jnp.float32)

    layer_params = []                                   # BN folded into Lin1 / Lin2, f32
    for i in range(NUM_LAYERS):
        din = F_IN if i == 0 else DIM
        w1, b1 = linear(next(ki), din, DIM)
        w2, b2 = linear(next(ki), DIM, DIM)
        layer_params.append((w1 * bn_scale, b1 * bn_scale + bn_shift,
                             w2 * bn_scale, b2 * bn_scale + bn_shift))

    fc_params = [linear(next(ki), F_IN, C)] + \
                [linear(next(ki), DIM, C) for _ in range(NUM_LAYERS)]

    # --- node dropout (each (run, node) zeroed with probability p), runs folded in rows ---
    drop = jax.random.bernoulli(next(ki), P_DROP, (R, N))
    xr = jnp.where(drop[:, :, None], 0.0, jnp.broadcast_to(x, (R, N, F_IN)))   # (R, N, F_IN)
    x_flat = xr.reshape(R * N, F_IN)

    # --- pack operands for the kernel (bf16 MXU operands, f32 biases) ---
    def pad_rows(w, rows):
        return jnp.pad(w, ((0, rows - w.shape[0]), (0, 0)))

    x_pad = jnp.pad(x_flat, ((0, 0), (0, DIM - F_IN))).astype(jnp.bfloat16)        # (R*N, D)
    w1_stack = jnp.stack([pad_rows(w1, DIM)
                          for (w1, _, _, _) in layer_params]).astype(jnp.bfloat16)  # (L, D, D)
    w2_stack = jnp.stack([w2 for (_, _, w2, _) in layer_params]).astype(jnp.bfloat16)  # (L, D, D)
    b_stack = jnp.stack([jnp.concatenate([b1, b2], axis=0)
                         for (_, b1, _, b2) in layer_params]).astype(jnp.float32)    # (L, 2, D)
    wfc_stack = jnp.stack([pad_rows(w, DIM)
                           for (w, _) in fc_params]).astype(jnp.bfloat16)            # (L+1, D, C)
    fc_bias_sum = sum(b for (_, b) in fc_params).astype(jnp.float32)                 # (1, C)

    # TODO(synk): use_aux_loss=True branch (per-run pooling + aux heads) not implemented;
    # module returns (log_softmax(out), 0) in the use_aux_loss=False path modeled here.
    logp = dropgin_forward(A_big.astype(jnp.bfloat16), x_pad, P_big.astype(jnp.bfloat16),
                           w1_stack, w2_stack, b_stack, wfc_stack, fc_bias_sum)
    jax.block_until_ready(logp)

    # --- pure-JAX f32 reference (mirrors the PyTorch eval-mode forward) ---
    def reference():
        h = xr                                            # (R, N, F_IN)
        outs = [h]
        for (w1, b1, w2, b2) in layer_params:
            agg = jnp.einsum('nm,rmf->rnf', A_hat, h)
            h = jnp.maximum(agg @ w1 + b1, 0.0)
            h = jnp.maximum(h @ w2 + b2, 0.0)
            outs.append(h)
        out = jnp.zeros((G, C), jnp.float32)
        for i, hi in enumerate(outs):
            pooled = P @ hi.mean(axis=0)                  # mean over runs -> global_add_pool
            w, b = fc_params[i]
            out = out + pooled @ w + b                    # dropout = identity in eval
        return jax.nn.log_softmax(out, axis=-1)

    ref = reference()
    max_err = float(jnp.max(jnp.abs(logp - ref)))
    assert max_err < 0.25, f"kernel vs reference mismatch: max |err| = {max_err}"
    print("KERNEL_OK")
</pallas_src>

<mosaic_0001>
module attributes {stable_mosaic.version = 11 : i64} {
  func.func @kernel(%arg0: memref<128x128xbf16, #tpu.memory_space<vmem>>, %arg1: memref<128x32xbf16, #tpu.memory_space<vmem>>, %arg2: memref<2x128xbf16, #tpu.memory_space<vmem>>, %arg3: memref<4x32x32xbf16, #tpu.memory_space<vmem>>, %arg4: memref<4x32x32xbf16, #tpu.memory_space<vmem>>, %arg5: memref<4x2x32xf32, #tpu.memory_space<vmem>>, %arg6: memref<5x32x4xbf16, #tpu.memory_space<vmem>>, %arg7: memref<1x4xf32, #tpu.memory_space<vmem>>, %arg8: memref<2x4xf32, #tpu.memory_space<vmem>>) attributes {dimension_semantics = [], scalar_prefetch = 0 : i64, scratch_operands = 0 : i64, tpu.core_type = #tpu.core_type<tc>} {
    %c0 = arith.constant 0 : index
    %c0_0 = arith.constant 0 : index
    %0 = vector.load %arg0[%c0, %c0_0] : memref<128x128xbf16, #tpu.memory_space<vmem>>, vector<128x128xbf16>
    %c0_1 = arith.constant 0 : index
    %c0_2 = arith.constant 0 : index
    %1 = vector.load %arg2[%c0_1, %c0_2] : memref<2x128xbf16, #tpu.memory_space<vmem>>, vector<2x128xbf16>
    %c0_3 = arith.constant 0 : index
    %c0_4 = arith.constant 0 : index
    %c0_5 = arith.constant 0 : index
    %2 = vector.load %arg5[%c0_3, %c0_4, %c0_5] : memref<4x2x32xf32, #tpu.memory_space<vmem>>, vector<4x2x32xf32>
    %c0_6 = arith.constant 0 : index
    %c0_7 = arith.constant 0 : index
    %3 = vector.load %arg1[%c0_6, %c0_7] : memref<128x32xbf16, #tpu.memory_space<vmem>>, vector<128x32xbf16>
    %cst = arith.constant dense<0.000000e+00> : vector<2x32xf32>
    %4 = tpu.matmul %1, %3, %cst {dimension_numbers = #tpu.dot_dimension_numbers<[1], [0], [0], [1], [0, 0, 1, 1], [], []>} : vector<2x128xbf16>, vector<128x32xbf16>, vector<2x32xf32> -> vector<2x32xf32>
    %5 = arith.truncf %4 : vector<2x32xf32> to vector<2x32xbf16>
    %c0_8 = arith.constant 0 : index
    %c0_9 = arith.constant 0 : index
    %c0_10 = arith.constant 0 : index
    %6 = vector.load %arg6[%c0_8, %c0_9, %c0_10] : memref<5x32x4xbf16, #tpu.memory_space<vmem>>, vector<1x32x4xbf16>
    %7 = vector.shape_cast %6 : vector<1x32x4xbf16> to vector<32x4xbf16>
    %cst_11 = arith.constant dense<0.000000e+00> : vector<2x4xf32>
    %8 = tpu.matmul %5, %7, %cst_11 {dimension_numbers = #tpu.dot_dimension_numbers<[1], [0], [0], [1], [0, 0, 1, 1], [], []>} : vector<2x32xbf16>, vector<32x4xbf16>, vector<2x4xf32> -> vector<2x4xf32>
    %c0_12 = arith.constant 0 : index
    %c0_13 = arith.constant 0 : index
    %c0_14 = arith.constant 0 : index
    %9 = vector.load %arg3[%c0_12, %c0_13, %c0_14] : memref<4x32x32xbf16, #tpu.memory_space<vmem>>, vector<1x32x32xbf16>
    %10 = vector.shape_cast %9 : vector<1x32x32xbf16> to vector<32x32xbf16>
    %c0_15 = arith.constant 0 : index
    %c0_16 = arith.constant 0 : index
    %c0_17 = arith.constant 0 : index
    %11 = vector.load %arg4[%c0_15, %c0_16, %c0_17] : memref<4x32x32xbf16, #tpu.memory_space<vmem>>, vector<1x32x32xbf16>
    %12 = vector.shape_cast %11 : vector<1x32x32xbf16> to vector<32x32xbf16>
    %13 = vector.extract_strided_slice %2 {offsets = [0, 0, 0], sizes = [1, 1, 32], strides = [1, 1, 1]} : vector<4x2x32xf32> to vector<1x1x32xf32>
    %14 = vector.shape_cast %13 : vector<1x1x32xf32> to vector<1x32xf32>
    %15 = vector.extract_strided_slice %2 {offsets = [0, 1, 0], sizes = [1, 1, 32], strides = [1, 1, 1]} : vector<4x2x32xf32> to vector<1x1x32xf32>
    %16 = vector.shape_cast %15 : vector<1x1x32xf32> to vector<1x32xf32>
    %cst_18 = arith.constant dense<0.000000e+00> : vector<128x32xf32>
    %17 = tpu.matmul %0, %3, %cst_18 {dimension_numbers = #tpu.dot_dimension_numbers<[1], [0], [0], [1], [0, 0, 1, 1], [], []>} : vector<128x128xbf16>, vector<128x32xbf16>, vector<128x32xf32> -> vector<128x32xf32>
    %18 = arith.truncf %17 : vector<128x32xf32> to vector<128x32xbf16>
    %cst_19 = arith.constant dense<0.000000e+00> : vector<128x32xf32>
    %19 = tpu.matmul %18, %10, %cst_19 {dimension_numbers = #tpu.dot_dimension_numbers<[1], [0], [0], [1], [0, 0, 1, 1], [], []>} : vector<128x32xbf16>, vector<32x32xbf16>, vector<128x32xf32> -> vector<128x32xf32>
    %20 = vector.broadcast %14 : vector<1x32xf32> to vector<128x32xf32>
    %21 = arith.addf %19, %20 : vector<128x32xf32>
    %cst_20 = arith.constant 0.000000e+00 : f32
    %22 = vector.broadcast %cst_20 : f32 to vector<128x32xf32>
    %23 = arith.maximumf %21, %22 : vector<128x32xf32>
    %24 = arith.truncf %23 : vector<128x32xf32> to vector<128x32xbf16>
    %cst_21 = arith.constant dense<0.000000e+00> : vector<128x32xf32>
    %25 = tpu.matmul %24, %12, %cst_21 {dimension_numbers = #tpu.dot_dimension_numbers<[1], [0], [0], [1], [0, 0, 1, 1], [], []>} : vector<128x32xbf16>, vector<32x32xbf16>, vector<128x32xf32> -> vector<128x32xf32>
    %26 = vector.broadcast %16 : vector<1x32xf32> to vector<128x32xf32>
    %27 = arith.addf %25, %26 : vector<128x32xf32>
    %cst_22 = arith.constant 0.000000e+00 : f32
    %28 = vector.broadcast %cst_22 : f32 to vector<128x32xf32>
    %29 = arith.maximumf %27, %28 : vector<128x32xf32>
    %30 = arith.truncf %29 : vector<128x32xf32> to vector<128x32xbf16>
    %cst_23 = arith.constant dense<0.000000e+00> : vector<2x32xf32>
    %31 = tpu.matmul %1, %30, %cst_23 {dimension_numbers = #tpu.dot_dimension_numbers<[1], [0], [0], [1], [0, 0, 1, 1], [], []>} : vector<2x128xbf16>, vector<128x32xbf16>, vector<2x32xf32> -> vector<2x32xf32>
    %32 = arith.truncf %31 : vector<2x32xf32> to vector<2x32xbf16>
    %c1 = arith.constant 1 : index
    %c0_24 = arith.constant 0 : index
    %c0_25 = arith.constant 0 : index
    %33 = vector.load %arg6[%c1, %c0_24, %c0_25] : memref<5x32x4xbf16, #tpu.memory_space<vmem>>, vector<1x32x4xbf16>
    %34 = vector.shape_cast %33 : vector<1x32x4xbf16> to vector<32x4xbf16>
    %cst_26 = arith.constant dense<0.000000e+00> : vector<2x4xf32>
    %35 = tpu.matmul %32, %34, %cst_26 {dimension_numbers = #tpu.dot_dimension_numbers<[1], [0], [0], [1], [0, 0, 1, 1], [], []>} : vector<2x32xbf16>, vector<32x4xbf16>, vector<2x4xf32> -> vector<2x4xf32>
    %36 = arith.addf %8, %35 : vector<2x4xf32>
    %c1_27 = arith.constant 1 : index
    %c0_28 = arith.constant 0 : index
    %c0_29 = arith.constant 0 : index
    %37 = vector.load %arg3[%c1_27, %c0_28, %c0_29] : memref<4x32x32xbf16, #tpu.memory_space<vmem>>, vector<1x32x32xbf16>
    %38 = vector.shape_cast %37 : vector<1x32x32xbf16> to vector<32x32xbf16>
    %c1_30 = arith.constant 1 : index
    %c0_31 = arith.constant 0 : index
    %c0_32 = arith.constant 0 : index
    %39 = vector.load %arg4[%c1_30, %c0_31, %c0_32] : memref<4x32x32xbf16, #tpu.memory_space<vmem>>, vector<1x32x32xbf16>
    %40 = vector.shape_cast %39 : vector<1x32x32xbf16> to vector<32x32xbf16>
    %41 = vector.extract_strided_slice %2 {offsets = [1, 0, 0], sizes = [1, 1, 32], strides = [1, 1, 1]} : vector<4x2x32xf32> to vector<1x1x32xf32>
    %42 = vector.shape_cast %41 : vector<1x1x32xf32> to vector<1x32xf32>
    %43 = vector.extract_strided_slice %2 {offsets = [1, 1, 0], sizes = [1, 1, 32], strides = [1, 1, 1]} : vector<4x2x32xf32> to vector<1x1x32xf32>
    %44 = vector.shape_cast %43 : vector<1x1x32xf32> to vector<1x32xf32>
    %cst_33 = arith.constant dense<0.000000e+00> : vector<128x32xf32>
    %45 = tpu.matmul %0, %30, %cst_33 {dimension_numbers = #tpu.dot_dimension_numbers<[1], [0], [0], [1], [0, 0, 1, 1], [], []>} : vector<128x128xbf16>, vector<128x32xbf16>, vector<128x32xf32> -> vector<128x32xf32>
    %46 = arith.truncf %45 : vector<128x32xf32> to vector<128x32xbf16>
    %cst_34 = arith.constant dense<0.000000e+00> : vector<128x32xf32>
    %47 = tpu.matmul %46, %38, %cst_34 {dimension_numbers = #tpu.dot_dimension_numbers<[1], [0], [0], [1], [0, 0, 1, 1], [], []>} : vector<128x32xbf16>, vector<32x32xbf16>, vector<128x32xf32> -> vector<128x32xf32>
    %48 = vector.broadcast %42 : vector<1x32xf32> to vector<128x32xf32>
    %49 = arith.addf %47, %48 : vector<128x32xf32>
    %cst_35 = arith.constant 0.000000e+00 : f32
    %50 = vector.broadcast %cst_35 : f32 to vector<128x32xf32>
    %51 = arith.maximumf %49, %50 : vector<128x32xf32>
    %52 = arith.truncf %51 : vector<128x32xf32> to vector<128x32xbf16>
    %cst_36 = arith.constant dense<0.000000e+00> : vector<128x32xf32>
    %53 = tpu.matmul %52, %40, %cst_36 {dimension_numbers = #tpu.dot_dimension_numbers<[1], [0], [0], [1], [0, 0, 1, 1], [], []>} : vector<128x32xbf16>, vector<32x32xbf16>, vector<128x32xf32> -> vector<128x32xf32>
    %54 = vector.broadcast %44 : vector<1x32xf32> to vector<128x32xf32>
    %55 = arith.addf %53, %54 : vector<128x32xf32>
    %cst_37 = arith.constant 0.000000e+00 : f32
    %56 = vector.broadcast %cst_37 : f32 to vector<128x32xf32>
    %57 = arith.maximumf %55, %56 : vector<128x32xf32>
    %58 = arith.truncf %57 : vector<128x32xf32> to vector<128x32xbf16>
    %cst_38 = arith.constant dense<0.000000e+00> : vector<2x32xf32>
    %59 = tpu.matmul %1, %58, %cst_38 {dimension_numbers = #tpu.dot_dimension_numbers<[1], [0], [0], [1], [0, 0, 1, 1], [], []>} : vector<2x128xbf16>, vector<128x32xbf16>, vector<2x32xf32> -> vector<2x32xf32>
    %60 = arith.truncf %59 : vector<2x32xf32> to vector<2x32xbf16>
    %c2 = arith.constant 2 : index
    %c0_39 = arith.constant 0 : index
    %c0_40 = arith.constant 0 : index
    %61 = vector.load %arg6[%c2, %c0_39, %c0_40] : memref<5x32x4xbf16, #tpu.memory_space<vmem>>, vector<1x32x4xbf16>
    %62 = vector.shape_cast %61 : vector<1x32x4xbf16> to vector<32x4xbf16>
    %cst_41 = arith.constant dense<0.000000e+00> : vector<2x4xf32>
    %63 = tpu.matmul %60, %62, %cst_41 {dimension_numbers = #tpu.dot_dimension_numbers<[1], [0], [0], [1], [0, 0, 1, 1], [], []>} : vector<2x32xbf16>, vector<32x4xbf16>, vector<2x4xf32> -> vector<2x4xf32>
    %64 = arith.addf %36, %63 : vector<2x4xf32>
    %c2_42 = arith.constant 2 : index
    %c0_43 = arith.constant 0 : index
    %c0_44 = arith.constant 0 : index
    %65 = vector.load %arg3[%c2_42, %c0_43, %c0_44] : memref<4x32x32xbf16, #tpu.memory_space<vmem>>, vector<1x32x32xbf16>
    %66 = vector.shape_cast %65 : vector<1x32x32xbf16> to vector<32x32xbf16>
    %c2_45 = arith.constant 2 : index
    %c0_46 = arith.constant 0 : index
    %c0_47 = arith.constant 0 : index
    %67 = vector.load %arg4[%c2_45, %c0_46, %c0_47] : memref<4x32x32xbf16, #tpu.memory_space<vmem>>, vector<1x32x32xbf16>
    %68 = vector.shape_cast %67 : vector<1x32x32xbf16> to vector<32x32xbf16>
    %69 = vector.extract_strided_slice %2 {offsets = [2, 0, 0], sizes = [1, 1, 32], strides = [1, 1, 1]} : vector<4x2x32xf32> to vector<1x1x32xf32>
    %70 = vector.shape_cast %69 : vector<1x1x32xf32> to vector<1x32xf32>
    %71 = vector.extract_strided_slice %2 {offsets = [2, 1, 0], sizes = [1, 1, 32], strides = [1, 1, 1]} : vector<4x2x32xf32> to vector<1x1x32xf32>
    %72 = vector.shape_cast %71 : vector<1x1x32xf32> to vector<1x32xf32>
    %cst_48 = arith.constant dense<0.000000e+00> : vector<128x32xf32>
    %73 = tpu.matmul %0, %58, %cst_48 {dimension_numbers = #tpu.dot_dimension_numbers<[1], [0], [0], [1], [0, 0, 1, 1], [], []>} : vector<128x128xbf16>, vector<128x32xbf16>, vector<128x32xf32> -> vector<128x32xf32>
    %74 = arith.truncf %73 : vector<128x32xf32> to vector<128x32xbf16>
    %cst_49 = arith.constant dense<0.000000e+00> : vector<128x32xf32>
    %75 = tpu.matmul %74, %66, %cst_49 {dimension_numbers = #tpu.dot_dimension_numbers<[1], [0], [0], [1], [0, 0, 1, 1], [], []>} : vector<128x32xbf16>, vector<32x32xbf16>, vector<128x32xf32> -> vector<128x32xf32>
    %76 = vector.broadcast %70 : vector<1x32xf32> to vector<128x32xf32>
    %77 = arith.addf %75, %76 : vector<128x32xf32>
    %cst_50 = arith.constant 0.000000e+00 : f32
    %78 = vector.broadcast %cst_50 : f32 to vector<128x32xf32>
    %79 = arith.maximumf %77, %78 : vector<128x32xf32>
    %80 = arith.truncf %79 : vector<128x32xf32> to vector<128x32xbf16>
    %cst_51 = arith.constant dense<0.000000e+00> : vector<128x32xf32>
    %81 = tpu.matmul %80, %68, %cst_51 {dimension_numbers = #tpu.dot_dimension_numbers<[1], [0], [0], [1], [0, 0, 1, 1], [], []>} : vector<128x32xbf16>, vector<32x32xbf16>, vector<128x32xf32> -> vector<128x32xf32>
    %82 = vector.broadcast %72 : vector<1x32xf32> to vector<128x32xf32>
    %83 = arith.addf %81, %82 : vector<128x32xf32>
    %cst_52 = arith.constant 0.000000e+00 : f32
    %84 = vector.broadcast %cst_52 : f32 to vector<128x32xf32>
    %85 = arith.maximumf %83, %84 : vector<128x32xf32>
    %86 = arith.truncf %85 : vector<128x32xf32> to vector<128x32xbf16>
    %cst_53 = arith.constant dense<0.000000e+00> : vector<2x32xf32>
    %87 = tpu.matmul %1, %86, %cst_53 {dimension_numbers = #tpu.dot_dimension_numbers<[1], [0], [0], [1], [0, 0, 1, 1], [], []>} : vector<2x128xbf16>, vector<128x32xbf16>, vector<2x32xf32> -> vector<2x32xf32>
    %88 = arith.truncf %87 : vector<2x32xf32> to vector<2x32xbf16>
    %c3 = arith.constant 3 : index
    %c0_54 = arith.constant 0 : index
    %c0_55 = arith.constant 0 : index
    %89 = vector.load %arg6[%c3, %c0_54, %c0_55] : memref<5x32x4xbf16, #tpu.memory_space<vmem>>, vector<1x32x4xbf16>
    %90 = vector.shape_cast %89 : vector<1x32x4xbf16> to vector<32x4xbf16>
    %cst_56 = arith.constant dense<0.000000e+00> : vector<2x4xf32>
    %91 = tpu.matmul %88, %90, %cst_56 {dimension_numbers = #tpu.dot_dimension_numbers<[1], [0], [0], [1], [0, 0, 1, 1], [], []>} : vector<2x32xbf16>, vector<32x4xbf16>, vector<2x4xf32> -> vector<2x4xf32>
    %92 = arith.addf %64, %91 : vector<2x4xf32>
    %c3_57 = arith.constant 3 : index
    %c0_58 = arith.constant 0 : index
    %c0_59 = arith.constant 0 : index
    %93 = vector.load %arg3[%c3_57, %c0_58, %c0_59] : memref<4x32x32xbf16, #tpu.memory_space<vmem>>, vector<1x32x32xbf16>
    %94 = vector.shape_cast %93 : vector<1x32x32xbf16> to vector<32x32xbf16>
    %c3_60 = arith.constant 3 : index
    %c0_61 = arith.constant 0 : index
    %c0_62 = arith.constant 0 : index
    %95 = vector.load %arg4[%c3_60, %c0_61, %c0_62] : memref<4x32x32xbf16, #tpu.memory_space<vmem>>, vector<1x32x32xbf16>
    %96 = vector.shape_cast %95 : vector<1x32x32xbf16> to vector<32x32xbf16>
    %97 = vector.extract_strided_slice %2 {offsets = [3, 0, 0], sizes = [1, 1, 32], strides = [1, 1, 1]} : vector<4x2x32xf32> to vector<1x1x32xf32>
    %98 = vector.shape_cast %97 : vector<1x1x32xf32> to vector<1x32xf32>
    %99 = vector.extract_strided_slice %2 {offsets = [3, 1, 0], sizes = [1, 1, 32], strides = [1, 1, 1]} : vector<4x2x32xf32> to vector<1x1x32xf32>
    %100 = vector.shape_cast %99 : vector<1x1x32xf32> to vector<1x32xf32>
    %cst_63 = arith.constant dense<0.000000e+00> : vector<128x32xf32>
    %101 = tpu.matmul %0, %86, %cst_63 {dimension_numbers = #tpu.dot_dimension_numbers<[1], [0], [0], [1], [0, 0, 1, 1], [], []>} : vector<128x128xbf16>, vector<128x32xbf16>, vector<128x32xf32> -> vector<128x32xf32>
    %102 = arith.truncf %101 : vector<128x32xf32> to vector<128x32xbf16>
    %cst_64 = arith.constant dense<0.000000e+00> : vector<128x32xf32>
    %103 = tpu.matmul %102, %94, %cst_64 {dimension_numbers = #tpu.dot_dimension_numbers<[1], [0], [0], [1], [0, 0, 1, 1], [], []>} : vector<128x32xbf16>, vector<32x32xbf16>, vector<128x32xf32> -> vector<128x32xf32>
    %104 = vector.broadcast %98 : vector<1x32xf32> to vector<128x32xf32>
    %105 = arith.addf %103, %104 : vector<128x32xf32>
    %cst_65 = arith.constant 0.000000e+00 : f32
    %106 = vector.broadcast %cst_65 : f32 to vector<128x32xf32>
    %107 = arith.maximumf %105, %106 : vector<128x32xf32>
    %108 = arith.truncf %107 : vector<128x32xf32> to vector<128x32xbf16>
    %cst_66 = arith.constant dense<0.000000e+00> : vector<128x32xf32>
    %109 = tpu.matmul %108, %96, %cst_66 {dimension_numbers = #tpu.dot_dimension_numbers<[1], [0], [0], [1], [0, 0, 1, 1], [], []>} : vector<128x32xbf16>, vector<32x32xbf16>, vector<128x32xf32> -> vector<128x32xf32>
    %110 = vector.broadcast %100 : vector<1x32xf32> to vector<128x32xf32>
    %111 = arith.addf %109, %110 : vector<128x32xf32>
    %cst_67 = arith.constant 0.000000e+00 : f32
    %112 = vector.broadcast %cst_67 : f32 to vector<128x32xf32>
    %113 = arith.maximumf %111, %112 : vector<128x32xf32>
    %114 = arith.truncf %113 : vector<128x32xf32> to vector<128x32xbf16>
    %cst_68 = arith.constant dense<0.000000e+00> : vector<2x32xf32>
    %115 = tpu.matmul %1, %114, %cst_68 {dimension_numbers = #tpu.dot_dimension_numbers<[1], [0], [0], [1], [0, 0, 1, 1], [], []>} : vector<2x128xbf16>, vector<128x32xbf16>, vector<2x32xf32> -> vector<2x32xf32>
    %116 = arith.truncf %115 : vector<2x32xf32> to vector<2x32xbf16>
    %c4 = arith.constant 4 : index
    %c0_69 = arith.constant 0 : index
    %c0_70 = arith.constant 0 : index
    %117 = vector.load %arg6[%c4, %c0_69, %c0_70] : memref<5x32x4xbf16, #tpu.memory_space<vmem>>, vector<1x32x4xbf16>
    %118 = vector.shape_cast %117 : vector<1x32x4xbf16> to vector<32x4xbf16>
    %cst_71 = arith.constant dense<0.000000e+00> : vector<2x4xf32>
    %119 = tpu.matmul %116, %118, %cst_71 {dimension_numbers = #tpu.dot_dimension_numbers<[1], [0], [0], [1], [0, 0, 1, 1], [], []>} : vector<2x32xbf16>, vector<32x4xbf16>, vector<2x4xf32> -> vector<2x4xf32>
    %120 = arith.addf %92, %119 : vector<2x4xf32>
    %c0_72 = arith.constant 0 : index
    %c0_73 = arith.constant 0 : index
    %121 = vector.load %arg7[%c0_72, %c0_73] : memref<1x4xf32, #tpu.memory_space<vmem>>, vector<1x4xf32>
    %122 = vector.broadcast %121 : vector<1x4xf32> to vector<2x4xf32>
    %123 = arith.addf %120, %122 : vector<2x4xf32>
    %cst_74 = arith.constant dense<0xFF800000> : vector<2xf32>
    %124 = vector.multi_reduction <maximumf>, %123, %cst_74 [1] : vector<2x4xf32> to vector<2xf32>
    %125 = vector.shape_cast %124 : vector<2xf32> to vector<2x1xf32>
    %126 = vector.broadcast %125 : vector<2x1xf32> to vector<2x4xf32>
    %127 = arith.subf %123, %126 : vector<2x4xf32>
    %128 = math.exp %127 : vector<2x4xf32>
    %cst_75 = arith.constant dense<0.000000e+00> : vector<2xf32>
    %129 = vector.multi_reduction <add>, %128, %cst_75 [1] : vector<2x4xf32> to vector<2xf32>
    %130 = vector.shape_cast %129 : vector<2xf32> to vector<2x1xf32>
    %131 = math.log %130 : vector<2x1xf32>
    %132 = vector.broadcast %131 : vector<2x1xf32> to vector<2x4xf32>
    %133 = arith.subf %127, %132 : vector<2x4xf32>
    %c0_76 = arith.constant 0 : index
    %c0_77 = arith.constant 0 : index
    %134 = vector.load %arg8[%c0_76, %c0_77] : memref<2x4xf32, #tpu.memory_space<vmem>>, vector<2x4xf32>
    tpu.vector_store %arg8[%c0_76, %c0_77], %133 {strides = array<i32>} : memref<2x4xf32, #tpu.memory_space<vmem>>, vector<2x4xf32>,
    return
  }
}

</mosaic_0001>

<llo_original>
// kernel: tpu_custom_call.1
$region0: #{tpu_custom_call.1}
  #allocation0 [shape = 'u32[]', space=smem, size = 0x4, offset = 0x4, fixed_abs, tag = 'smem constant byte address 0x4 - core index']
  #allocation1 [shape = 'u32[144,128]{1,0:T(1,128)}', space=vmem, size = 0x12000, scoped, tag = 'internal scratch']
  %s0 = inlined_call_operand.vmem [shape: bf16[128,128], index: 0, kind: input, shape index: {}]
  %s1 = inlined_call_operand.vmem [shape: bf16[128,32], index: 1, kind: input, shape index: {}]
  %s2 = inlined_call_operand.vmem [shape: bf16[2,128], index: 2, kind: input, shape index: {}]
  %s3 = inlined_call_operand.vmem [shape: bf16[4,32,32], index: 3, kind: input, shape index: {}]
  %s4 = inlined_call_operand.hbm [shape: bf16[4,32,32], index: 4, kind: input, shape index: {}]
  %s5 = inlined_call_operand.vmem [shape: f32[4,2,32], index: 5, kind: input, shape index: {}]
  %s6 = inlined_call_operand.vmem [shape: bf16[5,32,4], index: 6, kind: input, shape index: {}]
  %s7 = inlined_call_operand.vmem [shape: f32[1,4], index: 7, kind: input, shape index: {}]
  %s8 = inlined_call_operand.hbm [shape: f32[2,4], index: 8, kind: output, shape index: {}]
  %s9 = sld [smem:[#allocation0]]
  $region46: #{tpu_custom_call.1} parent=0
    _
  %s11 = ssub.s32 1, %s9
  %s12 = scalar_select 0, %s11, %s9
  $region1: #{tpu_custom_call.1} parent=0
    #allocation2 [shape = 'u8[32768]{0}', space=vmem, size = 0x8000, scoped, tag = 'input window, operand 4, single buffered']
    #allocation3 [shape = 's32[1]{0}', space=sflag, size = 0x4, scoped, tag = 'scoped memory for tpu_custom_call.1']
    #allocation4 [shape = 's32[1]{0}', space=sflag, size = 0x4, scoped, tag = 'scoped memory for tpu_custom_call.1']
    #allocation5 [shape = 'u8[1024]{0}', space=vmem, size = 0x400, scoped, tag = 'output window, operand 0, single buffered']
    %13 = vsyncpa [#allocation3], 0
    %14 = vsyncpa [#allocation4], 0
    // Predicated region
    $region2: #{tpu_custom_call.1} parent=1 // pred_check
      _
    $region3: #{tpu_custom_call.1} parent=1 // pred_check_branch
      %16 = sbr.rel (0) target = $region5
    $region4: #{tpu_custom_call.1} parent=1 // pred_region
      _
    $region5: #{tpu_custom_call.1} parent=1 // pred_fallthru
      _
    // Predicated region
    $region6: #{tpu_custom_call.1} parent=1 // pred_check
      _
    $region7: #{tpu_custom_call.1} parent=1 // pred_check_branch
      %18 = sbr.rel (0) target = $region9
    $region8: #{tpu_custom_call.1} parent=1 // pred_region
      _
    $region9: #{tpu_custom_call.1} parent=1 // pred_fallthru
      _
    // Predicated region
    $region10: #{tpu_custom_call.1} parent=1 // pred_check
      _
    $region11: #{tpu_custom_call.1} parent=1 // pred_check_branch
      %20 = sbr.rel (0) target = $region13
    $region12: #{tpu_custom_call.1} parent=1 // pred_region
      _
    $region13: #{tpu_custom_call.1} parent=1 // pred_fallthru
      _
    // Predicated region
    $region14: #{tpu_custom_call.1} parent=1 // pred_check
      _
    $region15: #{tpu_custom_call.1} parent=1 // pred_check_branch
      %22 = sbr.rel (0) target = $region17
    $region16: #{tpu_custom_call.1} parent=1 // pred_region
      _
    $region17: #{tpu_custom_call.1} parent=1 // pred_fallthru
      _
    // Predicated region
    $region18: #{tpu_custom_call.1} parent=1 // pred_check
      _
    $region19: #{tpu_custom_call.1} parent=1 // pred_check_branch
      %24 = sbr.rel (0) target = $region21
    $region20: #{tpu_custom_call.1} parent=1 // pred_region
      %s26 = ssub.s32 1024, 1024
      %27 = vsyncadd [#allocation3], %s26
      %s28 = sshll.u32 [#allocation2], 4
      %s29 = int_to_ptr.vmem [resolvable:$true] %s28
      %34 = dma.hbm_to_vmem [thread:$0]  %s4, 1024, %s29, [#allocation3], 64, 64, 4
    $region21: #{tpu_custom_call.1} parent=1 // pred_fallthru
      _
    // Predicated region
    $region22: #{tpu_custom_call.1} parent=1 // pred_check
      _
    $region23: #{tpu_custom_call.1} parent=1 // pred_check_branch
      %36 = sbr.rel (0) target = $region25
    $region24: #{tpu_custom_call.1} parent=1 // pred_region
      _
    $region25: #{tpu_custom_call.1} parent=1 // pred_fallthru
      _
    // Predicated region
    $region26: #{tpu_custom_call.1} parent=1 // pred_check
      _
    $region27: #{tpu_custom_call.1} parent=1 // pred_check_branch
      %38 = sbr.rel (0) target = $region29
    $region28: #{tpu_custom_call.1} parent=1 // pred_region
      _
    $region29: #{tpu_custom_call.1} parent=1 // pred_fallthru
      _
    // Predicated region
    $region30: #{tpu_custom_call.1} parent=1 // pred_check
      _
    $region31: #{tpu_custom_call.1} parent=1 // pred_check_branch
      %40 = sbr.rel (0) target = $region33
    $region32: #{tpu_custom_call.1} parent=1 // pred_region
      _
    $region33: #{tpu_custom_call.1} parent=1 // pred_fallthru
      _
    // Predicated region
    $region34: #{tpu_custom_call.1} parent=1 // pred_check
      _
    $region35: #{tpu_custom_call.1} parent=1 // pred_check_branch
      %42 = sbr.rel (0) target = $region37
    $region36: #{tpu_custom_call.1} parent=1 // pred_region
      %43 = dma.done [#allocation3], 1024
    $region37: #{tpu_custom_call.1} parent=1 // pred_fallthru
      _
    %v45 = vld [vmem:[%s0] sm:$0xf]
    %v46 = vld [vmem:[%s0 + $0x4] sm:$0xf]
    %v47 = vld [vmem:[%s0 + $0x8] sm:$0xf]
    %v48 = vld [vmem:[%s0 + $0xc] sm:$0xf]
    %v49 = vld [vmem:[%s0 + $0x10] sm:$0xf]
    %v50 = vld [vmem:[%s0 + $0x14] sm:$0xf]
    %v51 = vld [vmem:[%s0 + $0x18] sm:$0xf]
    %v52 = vld [vmem:[%s0 + $0x1c] sm:$0xf]
    %v53 = vld [vmem:[%s0 + $0x20] sm:$0xf]
    %v54 = vld [vmem:[%s0 + $0x24] sm:$0xf]
    %v55 = vld [vmem:[%s0 + $0x28] sm:$0xf]
    %v56 = vld [vmem:[%s0 + $0x2c] sm:$0xf]
    %v57 = vld [vmem:[%s0 + $0x30] sm:$0xf]
    %v58 = vld [vmem:[%s0 + $0x34] sm:$0xf]
    %v59 = vld [vmem:[%s0 + $0x38] sm:$0xf]
    %v60 = vld [vmem:[%s0 + $0x3c] sm:$0xf]
    %v61 = vld [vmem:[%s2] sm:$0x1]
    %v62 = vld [vmem:[%s5] sm:$0x3]
    %v63 = vld [vmem:[%s5 + $0x2] sm:$0x3]
    %v64 = vld [vmem:[%s5 + $0x4] sm:$0x3]
    %v65 = vld [vmem:[%s5 + $0x6] sm:$0x3]
    %v66 = vld [vmem:[%s1] sm:$0xf]
    %v67 = vld [vmem:[%s1 + $0x4] sm:$0xf]
    %v68 = vld [vmem:[%s1 + $0x8] sm:$0xf]
    %v69 = vld [vmem:[%s1 + $0xc] sm:$0xf]
    %v70 = vld [vmem:[%s1 + $0x10] sm:$0xf]
    %v71 = vld [vmem:[%s1 + $0x14] sm:$0xf]
    %v72 = vld [vmem:[%s1 + $0x18] sm:$0xf]
    %v73 = vld [vmem:[%s1 + $0x1c] sm:$0xf]
    %v74 = vld [vmem:[%s1 + $0x20] sm:$0xf]
    %v75 = vld [vmem:[%s1 + $0x24] sm:$0xf]
    %v76 = vld [vmem:[%s1 + $0x28] sm:$0xf]
    %v77 = vld [vmem:[%s1 + $0x2c] sm:$0xf]
    %v78 = vld [vmem:[%s1 + $0x30] sm:$0xf]
    %v79 = vld [vmem:[%s1 + $0x34] sm:$0xf]
    %v80 = vld [vmem:[%s1 + $0x38] sm:$0xf]
    %v81 = vld [vmem:[%s1 + $0x3c] sm:$0xf]
    %v98 = vunpack.c.l.b16 %v66
    %v99 = vunpack.c.l.b16 %v67
    %v100 = vunpack.c.l.b16 %v68
    %v101 = vunpack.c.l.b16 %v69
    %v102 = vunpack.c.l.b16 %v70
    %v103 = vunpack.c.l.b16 %v71
    %v104 = vunpack.c.l.b16 %v72
    %v105 = vunpack.c.l.b16 %v73
    %v106 = vunpack.c.l.b16 %v74
    %v107 = vunpack.c.l.b16 %v75
    %v108 = vunpack.c.l.b16 %v76
    %v109 = vunpack.c.l.b16 %v77
    %v110 = vunpack.c.l.b16 %v78
    %v111 = vunpack.c.l.b16 %v79
    %v112 = vunpack.c.l.b16 %v80
    %v113 = vunpack.c.l.b16 %v81
    %v114 = vpack.c.b16 %v99, %v98
    %v115 = vpack.c.b16 %v101, %v100
    %v116 = vpack.c.b16 %v103, %v102
    %v117 = vpack.c.b16 %v105, %v104
    %v118 = vpack.c.b16 %v107, %v106
    %v119 = vpack.c.b16 %v109, %v108
    %v120 = vpack.c.b16 %v111, %v110
    %v121 = vpack.c.b16 %v113, %v112
    %130 = vmatprep.subr.bf16.mxu0 0
    %131 = vmatpush1.bf16.msra.mxu0 %v114
    %132 = vmatprep.subr.bf16.mxu0 0
    %133 = vmatpush1.bf16.msra.mxu0 %v115
    %134 = vmatprep.subr.bf16.mxu0 0
    %135 = vmatpush1.bf16.msra.mxu0 %v116
    %136 = vmatprep.subr.bf16.mxu0 0
    %137 = vmatpush1.bf16.msra.mxu0 %v117
    %138 = vmatprep.subr.bf16.mxu0 0
    %139 = vmatpush1.bf16.msra.mxu0 %v118
    %140 = vmatprep.subr.bf16.mxu0 0
    %141 = vmatpush1.bf16.msra.mxu0 %v119
    %142 = vmatprep.subr.bf16.mxu0 0
    %143 = vmatpush1.bf16.msra.mxu0 %v120
    %144 = vmatprep.subr.bf16.mxu0 0
    %145 = vmatpush1.bf16.msra.mxu0 %v121
    %146 = vmatprep.subr.bf16.mxu0 0
    %147 = vmatpush1.bf16.msra.mxu0 0
    %148 = vmatprep.subr.bf16.mxu0 0
    %149 = vmatpush1.bf16.msra.mxu0 0
    %150 = vmatprep.subr.bf16.mxu0 0
    %151 = vmatpush1.bf16.msra.mxu0 0
    %152 = vmatprep.subr.bf16.mxu0 0
    %153 = vmatpush1.bf16.msra.mxu0 0
    %154 = vmatprep.subr.bf16.mxu0 0
    %155 = vmatpush1.bf16.msra.mxu0 0
    %156 = vmatprep.subr.bf16.mxu0 0
    %157 = vmatpush1.bf16.msra.mxu0 0
    %158 = vmatprep.subr.bf16.mxu0 0
    %159 = vmatpush1.bf16.msra.mxu0 0
    %160 = vmatprep.subr.bf16.mxu0 0
    %161 = vmatpush1.bf16.msra.mxu0 0
    %162 = vmatprep.mubr.bf16.mxu0 0
    %163 = vmatmul.mubr.bf16.gmra.mrb[0].mxu0 %v61
    %v164 = vpop.f32.mrb[0].mxu0
    %v165 = vadd.f32 0.0, %v164
    %v166 = vpop.f32.mrb[0].mxu0
    %v167 = vpop.f32.mrb[0].mxu0
    %v168 = vpop.f32.mrb[0].mxu0
    %169 = vdwg.mxu0
    %v170 = vpack.c.bf16 %v165, %v165
    %v171 = vld [vmem:[%s6] sm:$0xf]
    %v172 = vld [vmem:[%s6 + $0x4] sm:$0xf]
    %v173 = vld [vmem:[%s6 + $0x8] sm:$0xf]
    %v174 = vld [vmem:[%s6 + $0xc] sm:$0xf]
    %v175 = vld [vmem:[%s3] sm:$0xf]
    %v176 = vld [vmem:[%s3 + $0x4] sm:$0xf]
    %v177 = vld [vmem:[%s3 + $0x8] sm:$0xf]
    %v178 = vld [vmem:[%s3 + $0xc] sm:$0xf]
    %v179 = vld [vmem:[#allocation2] sm:$0xf]
    %v180 = vld [vmem:[#allocation2 + $0x4] sm:$0xf]
    %v181 = vld [vmem:[#allocation2 + $0x8] sm:$0xf]
    %v182 = vld [vmem:[#allocation2 + $0xc] sm:$0xf]
    %v199 = vunpack.c.l.b16 %v45
    %v200 = vunpack.c.l.b16 %v46
    %v201 = vunpack.c.l.b16 %v47
    %v202 = vunpack.c.l.b16 %v48
    %v203 = vunpack.c.l.b16 %v49
    %v204 = vunpack.c.l.b16 %v50
    %v205 = vunpack.c.l.b16 %v51
    %v206 = vunpack.c.l.b16 %v52
    %v207 = vunpack.c.l.b16 %v53
    %v208 = vunpack.c.l.b16 %v54
    %v209 = vunpack.c.l.b16 %v55
    %v210 = vunpack.c.l.b16 %v56
    %v211 = vunpack.c.l.b16 %v57
    %v212 = vunpack.c.l.b16 %v58
    %v213 = vunpack.c.l.b16 %v59
    %v214 = vunpack.c.l.b16 %v60
    %v215 = vpack.c.b16 %v200, %v199
    %v216 = vpack.c.b16 %v202, %v201
    %v217 = vpack.c.b16 %v204, %v203
    %v218 = vpack.c.b16 %v206, %v205
    %v219 = vpack.c.b16 %v208, %v207
    %v220 = vpack.c.b16 %v210, %v209
    %v221 = vpack.c.b16 %v212, %v211
    %v222 = vpack.c.b16 %v214, %v213
    %231 = vmatprep.subr.bf16.mxu0 0
    %232 = vmatpush1.bf16.msra.mxu0 %v114
    %233 = vmatprep.subr.bf16.mxu0 0
    %234 = vmatpush1.bf16.msra.mxu0 %v115
    %235 = vmatprep.subr.bf16.mxu0 0
    %236 = vmatpush1.bf16.msra.mxu0 %v116
    %237 = vmatprep.subr.bf16.mxu0 0
    %238 = vmatpush1.bf16.msra.mxu0 %v117
    %239 = vmatprep.subr.bf16.mxu0 0
    %240 = vmatpush1.bf16.msra.mxu0 %v118
    %241 = vmatprep.subr.bf16.mxu0 0
    %242 = vmatpush1.bf16.msra.mxu0 %v119
    %243 = vmatprep.subr.bf16.mxu0 0
    %244 = vmatpush1.bf16.msra.mxu0 %v120
    %245 = vmatprep.subr.bf16.mxu0 0
    %246 = vmatpush1.bf16.msra.mxu0 %v121
    %247 = vmatprep.subr.bf16.mxu0 0
    %248 = vmatpush1.bf16.msra.mxu0 0
    %249 = vmatprep.subr.bf16.mxu0 0
    %250 = vmatpush1.bf16.msra.mxu0 0
    %251 = vmatprep.subr.bf16.mxu0 0
    %252 = vmatpush1.bf16.msra.mxu0 0
    %253 = vmatprep.subr.bf16.mxu0 0
    %254 = vmatpush1.bf16.msra.mxu0 0
    %255 = vmatprep.subr.bf16.mxu0 0
    %256 = vmatpush1.bf16.msra.mxu0 0
    %257 = vmatprep.subr.bf16.mxu0 0
    %258 = vmatpush1.bf16.msra.mxu0 0
    %259 = vmatprep.subr.bf16.mxu0 0
    %260 = vmatpush1.bf16.msra.mxu0 0
    %261 = vmatprep.subr.bf16.mxu0 0
    %262 = vmatpush1.bf16.msra.mxu0 0
    %263 = vmatprep.mubr.bf16.mxu0 0
    %264 = vmatmul.mubr.bf16.gmra.mrb[0].mxu0 %v215
    %v265 = vpop.f32.mrb[0].mxu0
    %v266 = vadd.f32 0.0, %v265
    %v267 = vpop.f32.mrb[0].mxu0
    %v268 = vpop.f32.mrb[0].mxu0
    %v269 = vadd.f32 0.0, %v268
    %v270 = vpop.f32.mrb[0].mxu0
    %271 = vmatprep.mubr.bf16.mxu0 0
    %272 = vmatmul.mubr.bf16.gmra.mrb[0].mxu0 %v216
    %v273 = vpop.f32.mrb[0].mxu0
    %v274 = vadd.f32 0.0, %v273
    %v275 = vpop.f32.mrb[0].mxu0
    %v276 = vpop.f32.mrb[0].mxu0
    %v277 = vadd.f32 0.0, %v276
    %v278 = vpop.f32.mrb[0].mxu0
    %279 = vmatprep.mubr.bf16.mxu0 0
    %280 = vmatmul.mubr.bf16.gmra.mrb[0].mxu0 %v217
    %v281 = vpop.f32.mrb[0].mxu0
    %v282 = vadd.f32 0.0, %v281
    %v283 = vpop.f32.mrb[0].mxu0
    %v284 = vpop.f32.mrb[0].mxu0
    %v285 = vadd.f32 0.0, %v284
    %v286 = vpop.f32.mrb[0].mxu0
    %287 = vmatprep.mubr.bf16.mxu0 0
    %288 = vmatmul.mubr.bf16.gmra.mrb[0].mxu0 %v218
    %v289 = vpop.f32.mrb[0].mxu0
    %v290 = vadd.f32 0.0, %v289
    %v291 = vpop.f32.mrb[0].mxu0
    %v292 = vpop.f32.mrb[0].mxu0
    %v293 = vadd.f32 0.0, %v292
    %v294 = vpop.f32.mrb[0].mxu0
    %295 = vmatprep.mubr.bf16.mxu0 0
    %296 = vmatmul.mubr.bf16.gmra.mrb[0].mxu0 %v219
    %v297 = vpop.f32.mrb[0].mxu0
    %v298 = vadd.f32 0.0, %v297
    %v299 = vpop.f32.mrb[0].mxu0
    %v300 = vpop.f32.mrb[0].mxu0
    %v301 = vadd.f32 0.0, %v300
    %v302 = vpop.f32.mrb[0].mxu0
    %303 = vmatprep.mubr.bf16.mxu0 0
    %304 = vmatmul.mubr.bf16.gmra.mrb[0].mxu0 %v220
    %v305 = vpop.f32.mrb[0].mxu0
    %v306 = vadd.f32 0.0, %v305
    %v307 = vpop.f32.mrb[0].mxu0
    %v308 = vpop.f32.mrb[0].mxu0
    %v309 = vadd.f32 0.0, %v308
    %v310 = vpop.f32.mrb[0].mxu0
    %311 = vmatprep.mubr.bf16.mxu0 0
    %312 = vmatmul.mubr.bf16.gmra.mrb[0].mxu0 %v221
    %v313 = vpop.f32.mrb[0].mxu0
    %v314 = vadd.f32 0.0, %v313
    %v315 = vpop.f32.mrb[0].mxu0
    %v316 = vpop.f32.mrb[0].mxu0
    %v317 = vadd.f32 0.0, %v316
    %v318 = vpop.f32.mrb[0].mxu0
    %319 = vmatprep.mubr.bf16.mxu0 0
    %320 = vmatmul.mubr.bf16.gmra.mrb[0].mxu0 %v222
    %v321 = vpop.f32.mrb[0].mxu0
    %v322 = vadd.f32 0.0, %v321
    %v323 = vpop.f32.mrb[0].mxu0
    %v324 = vpop.f32.mrb[0].mxu0
    %v325 = vadd.f32 0.0, %v324
    %v326 = vpop.f32.mrb[0].mxu0
    %327 = vdwg.mxu0
    %v328 = vpack.c.bf16 %v269, %v266
    %v329 = vpack.c.bf16 %v277, %v274
    %v330 = vpack.c.bf16 %v285, %v282
    %v331 = vpack.c.bf16 %v293, %v290
    %v332 = vpack.c.bf16 %v301, %v298
    %v333 = vpack.c.bf16 %v309, %v306
    %v334 = vpack.c.bf16 %v317, %v314
    %v335 = vpack.c.bf16 %v325, %v322
    %v336 = vlaneseq
    %v337 = vshrl.u32 %v336, 7
    %v338 = vsub.s32 0, %v337
    %v339 = vrot.slane %v62, %v338
    %v344 = vunpack.c.l.b16 %v175
    %v345 = vunpack.c.l.b16 %v176
    %v346 = vunpack.c.l.b16 %v177
    %v347 = vunpack.c.l.b16 %v178
    %v348 = vpack.c.b16 %v345, %v344
    %v349 = vpack.c.b16 %v347, %v346
    %vm352 = vcmask 261120
    %v354 = vsel %vm352, %v328, 0
    %v357 = vsel %vm352, %v329, 0
    %v360 = vsel %vm352, %v330, 0
    %v363 = vsel %vm352, %v331, 0
    %v366 = vsel %vm352, %v332, 0
    %v369 = vsel %vm352, %v333, 0
    %v372 = vsel %vm352, %v334, 0
    %v375 = vsel %vm352, %v335, 0
    %377 = vmatprep.subr.bf16.mxu0 0
    %378 = vmatpush1.bf16.msra.mxu0 %v348
    %379 = vmatprep.subr.bf16.mxu0 0
    %380 = vmatpush1.bf16.msra.mxu0 %v349
    %381 = vmatprep.subr.bf16.mxu0 0
    %382 = vmatpush1.bf16.msra.mxu0 0
    %383 = vmatprep.subr.bf16.mxu0 0
    %384 = vmatpush1.bf16.msra.mxu0 0
    %385 = vmatprep.subr.bf16.mxu0 0
    %386 = vmatpush1.bf16.msra.mxu0 0
    %387 = vmatprep.subr.bf16.mxu0 0
    %388 = vmatpush1.bf16.msra.mxu0 0
    %389 = vmatprep.subr.bf16.mxu0 0
    %390 = vmatpush1.bf16.msra.mxu0 0
    %391 = vmatprep.subr.bf16.mxu0 0
    %392 = vmatpush1.bf16.msra.mxu0 0
    %393 = vmatprep.subr.bf16.mxu0 0
    %394 = vmatpush1.bf16.msra.mxu0 0
    %395 = vmatprep.subr.bf16.mxu0 0
    %396 = vmatpush1.bf16.msra.mxu0 0
    %397 = vmatprep.subr.bf16.mxu0 0
    %398 = vmatpush1.bf16.msra.mxu0 0
    %399 = vmatprep.subr.bf16.mxu0 0
    %400 = vmatpush1.bf16.msra.mxu0 0
    %401 = vmatprep.subr.bf16.mxu0 0
    %402 = vmatpush1.bf16.msra.mxu0 0
    %403 = vmatprep.subr.bf16.mxu0 0
    %404 = vmatpush1.bf16.msra.mxu0 0
    %405 = vmatprep.subr.bf16.mxu0 0
    %406 = vmatpush1.bf16.msra.mxu0 0
    %407 = vmatprep.subr.bf16.mxu0 0
    %408 = vmatpush1.bf16.msra.mxu0 0
    %409 = vmatprep.mubr.bf16.mxu0 0
    %410 = vmatmul.mubr.bf16.gmra.mrb[0].mxu0 %v354
    %v411 = vpop.f32.mrb[0].mxu0
    %v412 = vadd.f32 %v339, %v411
    %v413 = vpop.f32.mrb[0].mxu0
    %v414 = vpop.f32.mrb[0].mxu0
    %v415 = vadd.f32 %v339, %v414
    %v416 = vpop.f32.mrb[0].mxu0
    %417 = vmatprep.mubr.bf16.mxu0 0
    %418 = vmatmul.mubr.bf16.gmra.mrb[0].mxu0 %v357
    %v419 = vpop.f32.mrb[0].mxu0
    %v420 = vadd.f32 %v339, %v419
    %v421 = vpop.f32.mrb[0].mxu0
    %v422 = vpop.f32.mrb[0].mxu0
    %v423 = vadd.f32 %v339, %v422
    %v424 = vpop.f32.mrb[0].mxu0
    %425 = vmatprep.mubr.bf16.mxu0 0
    %426 = vmatmul.mubr.bf16.gmra.mrb[0].mxu0 %v360
    %v427 = vpop.f32.mrb[0].mxu0
    %v428 = vadd.f32 %v339, %v427
    %v429 = vpop.f32.mrb[0].mxu0
    %v430 = vpop.f32.mrb[0].mxu0
    %v431 = vadd.f32 %v339, %v430
    %v432 = vpop.f32.mrb[0].mxu0
    %433 = vmatprep.mubr.bf16.mxu0 0
    %434 = vmatmul.mubr.bf16.gmra.mrb[0].mxu0 %v363
    %v435 = vpop.f32.mrb[0].mxu0
    %v436 = vadd.f32 %v339, %v435
    %v437 = vpop.f32.mrb[0].mxu0
    %v438 = vpop.f32.mrb[0].mxu0
    %v439 = vadd.f32 %v339, %v438
    %v440 = vpop.f32.mrb[0].mxu0
    %441 = vmatprep.mubr.bf16.mxu0 0
    %442 = vmatmul.mubr.bf16.gmra.mrb[0].mxu0 %v366
    %v443 = vpop.f32.mrb[0].mxu0
    %v444 = vadd.f32 %v339, %v443
    %v445 = vpop.f32.mrb[0].mxu0
    %v446 = vpop.f32.mrb[0].mxu0
    %v447 = vadd.f32 %v339, %v446
    %v448 = vpop.f32.mrb[0].mxu0
    %449 = vmatprep.mubr.bf16.mxu0 0
    %450 = vmatmul.mubr.bf16.gmra.mrb[0].mxu0 %v369
    %v451 = vpop.f32.mrb[0].mxu0
    %v452 = vadd.f32 %v339, %v451
    %v453 = vpop.f32.mrb[0].mxu0
    %v454 = vpop.f32.mrb[0].mxu0
    %v455 = vadd.f32 %v339, %v454
    %v456 = vpop.f32.mrb[0].mxu0
    %457 = vmatprep.mubr.bf16.mxu0 0
    %458 = vmatmul.mubr.bf16.gmra.mrb[0].mxu0 %v372
    %v459 = vpop.f32.mrb[0].mxu0
    %v460 = vadd.f32 %v339, %v459
    %v461 = vpop.f32.mrb[0].mxu0
    %v462 = vpop.f32.mrb[0].mxu0
    %v463 = vadd.f32 %v339, %v462
    %v464 = vpop.f32.mrb[0].mxu0
    %465 = vmatprep.mubr.bf16.mxu0 0
    %466 = vmatmul.mubr.bf16.gmra.mrb[0].mxu0 %v375
    %v467 = vpop.f32.mrb[0].mxu0
    %v468 = vadd.f32 %v339, %v467
    %v469 = vpop.f32.mrb[0].mxu0
    %v470 = vpop.f32.mrb[0].mxu0
    %v471 = vadd.f32 %v339, %v470
    %v472 = vpop.f32.mrb[0].mxu0
    %473 = vdwg.mxu0
    %v474 = vmax.f32 %v412, 0.0
    %v475 = vmax.f32 %v415, 0.0
    %v476 = vmax.f32 %v420, 0.0
    %v477 = vmax.f32 %v423, 0.0
    %v478 = vmax.f32 %v428, 0.0
    %v479 = vmax.f32 %v431, 0.0
    %v480 = vmax.f32 %v436, 0.0
    %v481 = vmax.f32 %v439, 0.0
    %v482 = vmax.f32 %v444, 0.0
    %v483 = vmax.f32 %v447, 0.0
    %v484 = vmax.f32 %v452, 0.0
    %v485 = vmax.f32 %v455, 0.0
    %v486 = vmax.f32 %v460, 0.0
    %v487 = vmax.f32 %v463, 0.0
    %v488 = vmax.f32 %v468, 0.0
    %v489 = vmax.f32 %v471, 0.0
    %v490 = vpack.c.bf16 %v475, %v474
    %v491 = vpack.c.bf16 %v477, %v476
    %v492 = vpack.c.bf16 %v479, %v478
    %v493 = vpack.c.bf16 %v481, %v480
    %v494 = vpack.c.bf16 %v483, %v482
    %v495 = vpack.c.bf16 %v485, %v484
    %v496 = vpack.c.bf16 %v487, %v486
    %v497 = vpack.c.bf16 %v489, %v488
    %v498 = vlaneseq
    %v499 = vshrl.u32 %v498, 7
    %v500 = vsub.s32 1, %v499
    %v501 = vrot.slane %v62, %v500
    %v506 = vunpack.c.l.b16 %v179
    %v507 = vunpack.c.l.b16 %v180
    %v508 = vunpack.c.l.b16 %v181
    %v509 = vunpack.c.l.b16 %v182
    %v510 = vpack.c.b16 %v507, %v506
    %v511 = vpack.c.b16 %v509, %v508
    %v515 = vsel %vm352, %v490, 0
    %v518 = vsel %vm352, %v491, 0
    %v521 = vsel %vm352, %v492, 0
    %v524 = vsel %vm352, %v493, 0
    %v527 = vsel %vm352, %v494, 0
    %v530 = vsel %vm352, %v495, 0
    %v533 = vsel %vm352, %v496, 0
    %v536 = vsel %vm352, %v497, 0
    %538 = vmatprep.subr.bf16.mxu0 0
    %539 = vmatpush1.bf16.msra.mxu0 %v510
    %540 = vmatprep.subr.bf16.mxu0 0
    %541 = vmatpush1.bf16.msra.mxu0 %v511
    %542 = vmatprep.subr.bf16.mxu0 0
    %543 = vmatpush1.bf16.msra.mxu0 0
    %544 = vmatprep.subr.bf16.mxu0 0
    %545 = vmatpush1.bf16.msra.mxu0 0
    %546 = vmatprep.subr.bf16.mxu0 0
    %547 = vmatpush1.bf16.msra.mxu0 0
    %548 = vmatprep.subr.bf16.mxu0 0
    %549 = vmatpush1.bf16.msra.mxu0 0
    %550 = vmatprep.subr.bf16.mxu0 0
    %551 = vmatpush1.bf16.msra.mxu0 0
    %552 = vmatprep.subr.bf16.mxu0 0
    %553 = vmatpush1.bf16.msra.mxu0 0
    %554 = vmatprep.subr.bf16.mxu0 0
    %555 = vmatpush1.bf16.msra.mxu0 0
    %556 = vmatprep.subr.bf16.mxu0 0
    %557 = vmatpush1.bf16.msra.mxu0 0
    %558 = vmatprep.subr.bf16.mxu0 0
    %559 = vmatpush1.bf16.msra.mxu0 0
    %560 = vmatprep.subr.bf16.mxu0 0
    %561 = vmatpush1.bf16.msra.mxu0 0
    %562 = vmatprep.subr.bf16.mxu0 0
    %563 = vmatpush1.bf16.msra.mxu0 0
    %564 = vmatprep.subr.bf16.mxu0 0
    %565 = vmatpush1.bf16.msra.mxu0 0
    %566 = vmatprep.subr.bf16.mxu0 0
    %567 = vmatpush1.bf16.msra.mxu0 0
    %568 = vmatprep.subr.bf16.mxu0 0
    %569 = vmatpush1.bf16.msra.mxu0 0
    %570 = vmatprep.mubr.bf16.mxu0 0
    %571 = vmatmul.mubr.bf16.gmra.mrb[0].mxu0 %v515
    %v572 = vpop.f32.mrb[0].mxu0
    %v573 = vadd.f32 %v501, %v572
    %v574 = vpop.f32.mrb[0].mxu0
    %v575 = vpop.f32.mrb[0].mxu0
    %v576 = vadd.f32 %v501, %v575
    %v577 = vpop.f32.mrb[0].mxu0
    %578 = vmatprep.mubr.bf16.mxu0 0
    %579 = vmatmul.mubr.bf16.gmra.mrb[0].mxu0 %v518
    %v580 = vpop.f32.mrb[0].mxu0
    %v581 = vadd.f32 %v501, %v580
    %v582 = vpop.f32.mrb[0].mxu0
    %v583 = vpop.f32.mrb[0].mxu0
    %v584 = vadd.f32 %v501, %v583
    %v585 = vpop.f32.mrb[0].mxu0
    %586 = vmatprep.mubr.bf16.mxu0 0
    %587 = vmatmul.mubr.bf16.gmra.mrb[0].mxu0 %v521
    %v588 = vpop.f32.mrb[0].mxu0
    %v589 = vadd.f32 %v501, %v588
    %v590 = vpop.f32.mrb[0].mxu0
    %v591 = vpop.f32.mrb[0].mxu0
    %v592 = vadd.f32 %v501, %v591
    %v593 = vpop.f32.mrb[0].mxu0
    %594 = vmatprep.mubr.bf16.mxu0 0
    %595 = vmatmul.mubr.bf16.gmra.mrb[0].mxu0 %v524
    %v596 = vpop.f32.mrb[0].mxu0
    %v597 = vadd.f32 %v501, %v596
    %v598 = vpop.f32.mrb[0].mxu0
    %v599 = vpop.f32.mrb[0].mxu0
    %v600 = vadd.f32 %v501, %v599
    %v601 = vpop.f32.mrb[0].mxu0
    %602 = vmatprep.mubr.bf16.mxu0 0
    %603 = vmatmul.mubr.bf16.gmra.mrb[0].mxu0 %v527
    %v604 = vpop.f32.mrb[0].mxu0
    %v605 = vadd.f32 %v501, %v604
    %v606 = vpop.f32.mrb[0].mxu0
    %v607 = vpop.f32.mrb[0].mxu0
    %v608 = vadd.f32 %v501, %v607
    %v609 = vpop.f32.mrb[0].mxu0
    %610 = vmatprep.mubr.bf16.mxu0 0
    %611 = vmatmul.mubr.bf16.gmra.mrb[0].mxu0 %v530
    %v612 = vpop.f32.mrb[0].mxu0
    %v613 = vadd.f32 %v501, %v612
    %v614 = vpop.f32.mrb[0].mxu0
    %v615 = vpop.f32.mrb[0].mxu0
    %v616 = vadd.f32 %v501, %v615
    %v617 = vpop.f32.mrb[0].mxu0
    %618 = vmatprep.mubr.bf16.mxu0 0
    %619 = vmatmul.mubr.bf16.gmra.mrb[0].mxu0 %v533
    %v620 = vpop.f32.mrb[0].mxu0
    %v621 = vadd.f32 %v501, %v620
    %v622 = vpop.f32.mrb[0].mxu0
    %v623 = vpop.f32.mrb[0].mxu0
    %v624 = vadd.f32 %v501, %v623
    %v625 = vpop.f32.mrb[0].mxu0
    %626 = vmatprep.mubr.bf16.mxu0 0
    %627 = vmatmul.mubr.bf16.gmra.mrb[0].mxu0 %v536
    %v628 = vpop.f32.mrb[0].mxu0
    %v629 = vadd.f32 %v501, %v628
    %v630 = vpop.f32.mrb[0].mxu0
    %v631 = vpop.f32.mrb[0].mxu0
    %v632 = vadd.f32 %v501, %v631
    %v633 = vpop.f32.mrb[0].mxu0
    %634 = vdwg.mxu0
    %v635 = vmax.f32 %v573, 0.0
    %v636 = vmax.f32 %v576, 0.0
    %v637 = vmax.f32 %v581, 0.0
    %v638 = vmax.f32 %v584, 0.0
    %v639 = vmax.f32 %v589, 0.0
    %v640 = vmax.f32 %v592, 0.0
    %v641 = vmax.f32 %v597, 0.0
    %v642 = vmax.f32 %v600, 0.0
    %v643 = vmax.f32 %v605, 0.0
    %v644 = vmax.f32 %v608, 0.0
    %v645 = vmax.f32 %v613, 0.0
    %v646 = vmax.f32 %v616, 0.0
    %v647 = vmax.f32 %v621, 0.0
    %v648 = vmax.f32 %v624, 0.0
    %v649 = vmax.f32 %v629, 0.0
    %v650 = vmax.f32 %v632, 0.0
    %v651 = vpack.c.bf16 %v636, %v635
    %v652 = vpack.c.bf16 %v638, %v637
    %v653 = vpack.c.bf16 %v640, %v639
    %v654 = vpack.c.bf16 %v642, %v641
    %v655 = vpack.c.bf16 %v644, %v643
    %v656 = vpack.c.bf16 %v646, %v645
    %v657 = vpack.c.bf16 %v648, %v647
    %v658 = vpack.c.bf16 %v650, %v649
    %659 = vmatprep.subr.bf16.mxu0 0
    %660 = vmatpush1.bf16.msra.mxu0 %v651
    %661 = vmatprep.subr.bf16.mxu0 0
    %662 = vmatpush1.bf16.msra.mxu0 %v652
    %663 = vmatprep.subr.bf16.mxu0 0
    %664 = vmatpush1.bf16.msra.mxu0 %v653
    %665 = vmatprep.subr.bf16.mxu0 0
    %666 = vmatpush1.bf16.msra.mxu0 %v654
    %667 = vmatprep.subr.bf16.mxu0 0
    %668 = vmatpush1.bf16.msra.mxu0 %v655
    %669 = vmatprep.subr.bf16.mxu0 0
    %670 = vmatpush1.bf16.msra.mxu0 %v656
    %671 = vmatprep.subr.bf16.mxu0 0
    %672 = vmatpush1.bf16.msra.mxu0 %v657
    %673 = vmatprep.subr.bf16.mxu0 0
    %674 = vmatpush1.bf16.msra.mxu0 %v658
    %675 = vmatprep.subr.bf16.mxu0 0
    %676 = vmatpush1.bf16.msra.mxu0 0
    %677 = vmatprep.subr.bf16.mxu0 0
    %678 = vmatpush1.bf16.msra.mxu0 0
    %679 = vmatprep.subr.bf16.mxu0 0
    %680 = vmatpush1.bf16.msra.mxu0 0
    %681 = vmatprep.subr.bf16.mxu0 0
    %682 = vmatpush1.bf16.msra.mxu0 0
    %683 = vmatprep.subr.bf16.mxu0 0
    %684 = vmatpush1.bf16.msra.mxu0 0
    %685 = vmatprep.subr.bf16.mxu0 0
    %686 = vmatpush1.bf16.msra.mxu0 0
    %687 = vmatprep.subr.bf16.mxu0 0
    %688 = vmatpush1.bf16.msra.mxu0 0
    %689 = vmatprep.subr.bf16.mxu0 0
    %690 = vmatpush1.bf16.msra.mxu0 0
    %691 = vmatprep.mubr.bf16.mxu0 0
    %692 = vmatmul.mubr.bf16.gmra.mrb[0].mxu0 %v61
    %v693 = vpop.f32.mrb[0].mxu0
    %v694 = vadd.f32 0.0, %v693
    %v695 = vpop.f32.mrb[0].mxu0
    %v696 = vpop.f32.mrb[0].mxu0
    %v697 = vpop.f32.mrb[0].mxu0
    %698 = vdwg.mxu0
    %v699 = vpack.c.bf16 %v694, %v694
    %s700 = scalar_lea.vmem %s6, 16
    %v701 = vld [vmem:[%s700] sm:$0xf]
    %v702 = vld [vmem:[%s700 + $0x4] sm:$0xf]
    %v703 = vld [vmem:[%s700 + $0x8] sm:$0xf]
    %v704 = vld [vmem:[%s700 + $0xc] sm:$0xf]
    %v709 = vunpack.c.l.b16 %v701
    %v710 = vunpack.c.l.b16 %v702
    %v711 = vunpack.c.l.b16 %v703
    %v712 = vunpack.c.l.b16 %v704
    %v713 = vpack.c.b16 %v710, %v709
    %v714 = vpack.c.b16 %v712, %v711
    %v718 = vsel %vm352, %v699, 0
    %720 = vmatprep.subr.bf16.mxu0 0
    %721 = vmatpush1.bf16.msra.mxu0 %v713
    %722 = vmatprep.subr.bf16.mxu0 0
    %723 = vmatpush1.bf16.msra.mxu0 %v714
    %724 = vmatprep.subr.bf16.mxu0 0
    %725 = vmatpush1.bf16.msra.mxu0 0
    %726 = vmatprep.subr.bf16.mxu0 0
    %727 = vmatpush1.bf16.msra.mxu0 0
    %728 = vmatprep.subr.bf16.mxu0 0
    %729 = vmatpush1.bf16.msra.mxu0 0
    %730 = vmatprep.subr.bf16.mxu0 0
    %731 = vmatpush1.bf16.msra.mxu0 0
    %732 = vmatprep.subr.bf16.mxu0 0
    %733 = vmatpush1.bf16.msra.mxu0 0
    %734 = vmatprep.subr.bf16.mxu0 0
    %735 = vmatpush1.bf16.msra.mxu0 0
    %736 = vmatprep.subr.bf16.mxu0 0
    %737 = vmatpush1.bf16.msra.mxu0 0
    %738 = vmatprep.subr.bf16.mxu0 0
    %739 = vmatpush1.bf16.msra.mxu0 0
    %740 = vmatprep.subr.bf16.mxu0 0
    %741 = vmatpush1.bf16.msra.mxu0 0
    %742 = vmatprep.subr.bf16.mxu0 0
    %743 = vmatpush1.bf16.msra.mxu0 0
    %744 = vmatprep.subr.bf16.mxu0 0
    %745 = vmatpush1.bf16.msra.mxu0 0
    %746 = vmatprep.subr.bf16.mxu0 0
    %747 = vmatpush1.bf16.msra.mxu0 0
    %748 = vmatprep.subr.bf16.mxu0 0
    %749 = vmatpush1.bf16.msra.mxu0 0
    %750 = vmatprep.subr.bf16.mxu0 0
    %751 = vmatpush1.bf16.msra.mxu0 0
    %752 = vmatprep.mubr.bf16.mxu0 0
    %753 = vmatmul.mubr.bf16.gmra.mrb[0].mxu0 %v718
    %v754 = vpop.f32.mrb[0].mxu0
    %v755 = vadd.f32 0.0, %v754
    %v756 = vpop.f32.mrb[0].mxu0
    %v757 = vpop.f32.mrb[0].mxu0
    %v758 = vpop.f32.mrb[0].mxu0
    %759 = vdwg.mxu0
    %v764 = vunpack.c.l.b16 %v171
    %v765 = vunpack.c.l.b16 %v172
    %v766 = vunpack.c.l.b16 %v173
    %v767 = vunpack.c.l.b16 %v174
    %v768 = vpack.c.b16 %v765, %v764
    %v769 = vpack.c.b16 %v767, %v766
    %v773 = vsel %vm352, %v170, 0
    %775 = vmatprep.subr.bf16.mxu0 0
    %776 = vmatpush1.bf16.msra.mxu0 %v768
    %777 = vmatprep.subr.bf16.mxu0 0
    %778 = vmatpush1.bf16.msra.mxu0 %v769
    %779 = vmatprep.subr.bf16.mxu0 0
    %780 = vmatpush1.bf16.msra.mxu0 0
    %781 = vmatprep.subr.bf16.mxu0 0
    %782 = vmatpush1.bf16.msra.mxu0 0
    %783 = vmatprep.subr.bf16.mxu0 0
    %784 = vmatpush1.bf16.msra.mxu0 0
    %785 = vmatprep.subr.bf16.mxu0 0
    %786 = vmatpush1.bf16.msra.mxu0 0
    %787 = vmatprep.subr.bf16.mxu0 0
    %788 = vmatpush1.bf16.msra.mxu0 0
    %789 = vmatprep.subr.bf16.mxu0 0
    %790 = vmatpush1.bf16.msra.mxu0 0
    %791 = vmatprep.subr.bf16.mxu0 0
    %792 = vmatpush1.bf16.msra.mxu0 0
    %793 = vmatprep.subr.bf16.mxu0 0
    %794 = vmatpush1.bf16.msra.mxu0 0
    %795 = vmatprep.subr.bf16.mxu0 0
    %796 = vmatpush1.bf16.msra.mxu0 0
    %797 = vmatprep.subr.bf16.mxu0 0
    %798 = vmatpush1.bf16.msra.mxu0 0
    %799 = vmatprep.subr.bf16.mxu0 0
    %800 = vmatpush1.bf16.msra.mxu0 0
    %801 = vmatprep.subr.bf16.mxu0 0
    %802 = vmatpush1.bf16.msra.mxu0 0
    %803 = vmatprep.subr.bf16.mxu0 0
    %804 = vmatpush1.bf16.msra.mxu0 0
    %805 = vmatprep.subr.bf16.mxu0 0
    %806 = vmatpush1.bf16.msra.mxu0 0
    %807 = vmatprep.mubr.bf16.mxu0 0
    %808 = vmatmul.mubr.bf16.gmra.mrb[0].mxu0 %v773
    %v809 = vpop.f32.mrb[0].mxu0
    %v810 = vadd.f32 %v755, %v809
    %v811 = vpop.f32.mrb[0].mxu0
    %v812 = vpop.f32.mrb[0].mxu0
    %v813 = vpop.f32.mrb[0].mxu0
    %814 = vdwg.mxu0
    %s815 = scalar_lea.vmem %s3, 16
    %v816 = vld [vmem:[%s815] sm:$0xf]
    %v817 = vld [vmem:[%s815 + $0x4] sm:$0xf]
    %v818 = vld [vmem:[%s815 + $0x8] sm:$0xf]
    %v819 = vld [vmem:[%s815 + $0xc] sm:$0xf]
    %s820 = scalar_lea.vmem [#allocation2], 16
    %v821 = vld [vmem:[%s820] sm:$0xf]
    %v822 = vld [vmem:[%s820 + $0x4] sm:$0xf]
    %v823 = vld [vmem:[%s820 + $0x8] sm:$0xf]
    %v824 = vld [vmem:[%s820 + $0xc] sm:$0xf]
    %825 = vmatprep.subr.bf16.mxu0 0
    %826 = vmatpush1.bf16.msra.mxu0 %v651
    %827 = vmatprep.subr.bf16.mxu0 0
    %828 = vmatpush1.bf16.msra.mxu0 %v652
    %829 = vmatprep.subr.bf16.mxu0 0
    %830 = vmatpush1.bf16.msra.mxu0 %v653
    %831 = vmatprep.subr.bf16.mxu0 0
    %832 = vmatpush1.bf16.msra.mxu0 %v654
    %833 = vmatprep.subr.bf16.mxu0 0
    %834 = vmatpush1.bf16.msra.mxu0 %v655
    %835 = vmatprep.subr.bf16.mxu0 0
    %836 = vmatpush1.bf16.msra.mxu0 %v656
    %837 = vmatprep.subr.bf16.mxu0 0
    %838 = vmatpush1.bf16.msra.mxu0 %v657
    %839 = vmatprep.subr.bf16.mxu0 0
    %840 = vmatpush1.bf16.msra.mxu0 %v658
    %841 = vmatprep.subr.bf16.mxu0 0
    %842 = vmatpush1.bf16.msra.mxu0 0
    %843 = vmatprep.subr.bf16.mxu0 0
    %844 = vmatpush1.bf16.msra.mxu0 0
    %845 = vmatprep.subr.bf16.mxu0 0
    %846 = vmatpush1.bf16.msra.mxu0 0
    %847 = vmatprep.subr.bf16.mxu0 0
    %848 = vmatpush1.bf16.msra.mxu0 0
    %849 = vmatprep.subr.bf16.mxu0 0
    %850 = vmatpush1.bf16.msra.mxu0 0
    %851 = vmatprep.subr.bf16.mxu0 0
    %852 = vmatpush1.bf16.msra.mxu0 0
    %853 = vmatprep.subr.bf16.mxu0 0
    %854 = vmatpush1.bf16.msra.mxu0 0
    %855 = vmatprep.subr.bf16.mxu0 0
    %856 = vmatpush1.bf16.msra.mxu0 0
    %857 = vmatprep.mubr.bf16.mxu0 0
    %858 = vmatmul.mubr.bf16.gmra.mrb[0].mxu0 %v215
    %v859 = vpop.f32.mrb[0].mxu0
    %v860 = vadd.f32 0.0, %v859
    %v861 = vpop.f32.mrb[0].mxu0
    %v862 = vpop.f32.mrb[0].mxu0
    %v863 = vadd.f32 0.0, %v862
    %v864 = vpop.f32.mrb[0].mxu0
    %865 = vmatprep.mubr.bf16.mxu0 0
    %866 = vmatmul.mubr.bf16.gmra.mrb[0].mxu0 %v216
    %v867 = vpop.f32.mrb[0].mxu0
    %v868 = vadd.f32 0.0, %v867
    %v869 = vpop.f32.mrb[0].mxu0
    %v870 = vpop.f32.mrb[0].mxu0
    %v871 = vadd.f32 0.0, %v870
    %v872 = vpop.f32.mrb[0].mxu0
    %873 = vmatprep.mubr.bf16.mxu0 0
    %874 = vmatmul.mubr.bf16.gmra.mrb[0].mxu0 %v217
    %v875 = vpop.f32.mrb[0].mxu0
    %v876 = vadd.f32 0.0, %v875
    %v877 = vpop.f32.mrb[0].mxu0
    %v878 = vpop.f32.mrb[0].mxu0
    %v879 = vadd.f32 0.0, %v878
    %v880 = vpop.f32.mrb[0].mxu0
    %881 = vmatprep.mubr.bf16.mxu0 0
    %882 = vmatmul.mubr.bf16.gmra.mrb[0].mxu0 %v218
    %v883 = vpop.f32.mrb[0].mxu0
    %v884 = vadd.f32 0.0, %v883
    %v885 = vpop.f32.mrb[0].mxu0
    %v886 = vpop.f32.mrb[0].mxu0
    %v887 = vadd.f32 0.0, %v886
    %v888 = vpop.f32.mrb[0].mxu0
    %889 = vmatprep.mubr.bf16.mxu0 0
    %890 = vmatmul.mubr.bf16.gmra.mrb[0].mxu0 %v219
    %v891 = vpop.f32.mrb[0].mxu0
    %v892 = vadd.f32 0.0, %v891
    %v893 = vpop.f32.mrb[0].mxu0
    %v894 = vpop.f32.mrb[0].mxu0
    %v895 = vadd.f32 0.0, %v894
    %v896 = vpop.f32.mrb[0].mxu0
    %897 = vmatprep.mubr.bf16.mxu0 0
    %898 = vmatmul.mubr.bf16.gmra.mrb[0].mxu0 %v220
    %v899 = vpop.f32.mrb[0].mxu0
    %v900 = vadd.f32 0.0, %v899
    %v901 = vpop.f32.mrb[0].mxu0
    %v902 = vpop.f32.mrb[0].mxu0
    %v903 = vadd.f32 0.0, %v902
    %v904 = vpop.f32.mrb[0].mxu0
    %905 = vmatprep.mubr.bf16.mxu0 0
    %906 = vmatmul.mubr.bf16.gmra.mrb[0].mxu0 %v221
    %v907 = vpop.f32.mrb[0].mxu0
    %v908 = vadd.f32 0.0, %v907
    %v909 = vpop.f32.mrb[0].mxu0
    %v910 = vpop.f32.mrb[0].mxu0
    %v911 = vadd.f32 0.0, %v910
    %v912 = vpop.f32.mrb[0].mxu0
    %913 = vmatprep.mubr.bf16.mxu0 0
    %914 = vmatmul.mubr.bf16.gmra.mrb[0].mxu0 %v222
    %v915 = vpop.f32.mrb[0].mxu0
    %v916 = vadd.f32 0.0, %v915
    %v917 = vpop.f32.mrb[0].mxu0
    %v918 = vpop.f32.mrb[0].mxu0
    %v919 = vadd.f32 0.0, %v918
    %v920 = vpop.f32.mrb[0].mxu0
    %921 = vdwg.mxu0
    %v922 = vpack.c.bf16 %v863, %v860
    %v923 = vpack.c.bf16 %v871, %v868
    %v924 = vpack.c.bf16 %v879, %v876
    %v925 = vpack.c.bf16 %v887, %v884
    %v926 = vpack.c.bf16 %v895, %v892
    %v927 = vpack.c.bf16 %v903, %v900
    %v928 = vpack.c.bf16 %v911, %v908
    %v929 = vpack.c.bf16 %v919, %v916
    %v930 = vlaneseq
    %v931 = vshrl.u32 %v930, 7
    %v932 = vsub.s32 0, %v931
    %v933 = vrot.slane %v63, %v932
    %v938 = vunpack.c.l.b16 %v816
    %v939 = vunpack.c.l.b16 %v817
    %v940 = vunpack.c.l.b16 %v818
    %v941 = vunpack.c.l.b16 %v819
    %v942 = vpack.c.b16 %v939, %v938
    %v943 = vpack.c.b16 %v941, %v940
    %v947 = vsel %vm352, %v922, 0
    %v950 = vsel %vm352, %v923, 0
    %v953 = vsel %vm352, %v924, 0
    %v956 = vsel %vm352, %v925, 0
    %v959 = vsel %vm352, %v926, 0
    %v962 = vsel %vm352, %v927, 0
    %v965 = vsel %vm352, %v928, 0
    %v968 = vsel %vm352, %v929, 0
    %970 = vmatprep.subr.bf16.mxu0 0
    %971 = vmatpush1.bf16.msra.mxu0 %v942
    %972 = vmatprep.subr.bf16.mxu0 0
    %973 = vmatpush1.bf16.msra.mxu0 %v943
    %974 = vmatprep.subr.bf16.mxu0 0
    %975 = vmatpush1.bf16.msra.mxu0 0
    %976 = vmatprep.subr.bf16.mxu0 0
    %977 = vmatpush1.bf16.msra.mxu0 0
    %978 = vmatprep.subr.bf16.mxu0 0
    %979 = vmatpush1.bf16.msra.mxu0 0
    %980 = vmatprep.subr.bf16.mxu0 0
    %981 = vmatpush1.bf16.msra.mxu0 0
    %982 = vmatprep.subr.bf16.mxu0 0
    %983 = vmatpush1.bf16.msra.mxu0 0
    %984 = vmatprep.subr.bf16.mxu0 0
    %985 = vmatpush1.bf16.msra.mxu0 0
    %986 = vmatprep.subr.bf16.mxu0 0
    %987 = vmatpush1.bf16.msra.mxu0 0
    %988 = vmatprep.subr.bf16.mxu0 0
    %989 = vmatpush1.bf16.msra.mxu0 0
    %990 = vmatprep.subr.bf16.mxu0 0
    %991 = vmatpush1.bf16.msra.mxu0 0
    %992 = vmatprep.subr.bf16.mxu0 0
    %993 = vmatpush1.bf16.msra.mxu0 0
    %994 = vmatprep.subr.bf16.mxu0 0
    %995 = vmatpush1.bf16.msra.mxu0 0
    %996 = vmatprep.subr.bf16.mxu0 0
    %997 = vmatpush1.bf16.msra.mxu0 0
    %998 = vmatprep.subr.bf16.mxu0 0
    %999 = vmatpush1.bf16.msra.mxu0 0
    %1000 = vmatprep.subr.bf16.mxu0 0
    %1001 = vmatpush1.bf16.msra.mxu0 0
    %1002 = vmatprep.mubr.bf16.mxu0 0
    %1003 = vmatmul.mubr.bf16.gmra.mrb[0].mxu0 %v947
    %v1004 = vpop.f32.mrb[0].mxu0
    %v1005 = vadd.f32 %v933, %v1004
    %v1006 = vpop.f32.mrb[0].mxu0
    %v1007 = vpop.f32.mrb[0].mxu0
    %v1008 = vadd.f32 %v933, %v1007
    %v1009 = vpop.f32.mrb[0].mxu0
    %1010 = vmatprep.mubr.bf16.mxu0 0
    %1011 = vmatmul.mubr.bf16.gmra.mrb[0].mxu0 %v950
    %v1012 = vpop.f32.mrb[0].mxu0
    %v1013 = vadd.f32 %v933, %v1012
    %v1014 = vpop.f32.mrb[0].mxu0
    %v1015 = vpop.f32.mrb[0].mxu0
    %v1016 = vadd.f32 %v933, %v1015
    %v1017 = vpop.f32.mrb[0].mxu0
    %1018 = vmatprep.mubr.bf16.mxu0 0
    %1019 = vmatmul.mubr.bf16.gmra.mrb[0].mxu0 %v953
    %v1020 = vpop.f32.mrb[0].mxu0
    %v1021 = vadd.f32 %v933, %v1020
    %v1022 = vpop.f32.mrb[0].mxu0
    %v1023 = vpop.f32.mrb[0].mxu0
    %v1024 = vadd.f32 %v933, %v1023
    %v1025 = vpop.f32.mrb[0].mxu0
    %1026 = vmatprep.mubr.bf16.mxu0 0
    %1027 = vmatmul.mubr.bf16.gmra.mrb[0].mxu0 %v956
    %v1028 = vpop.f32.mrb[0].mxu0
    %v1029 = vadd.f32 %v933, %v1028
    %v1030 = vpop.f32.mrb[0].mxu0
    %v1031 = vpop.f32.mrb[0].mxu0
    %v1032 = vadd.f32 %v933, %v1031
    %v1033 = vpop.f32.mrb[0].mxu0
    %1034 = vmatprep.mubr.bf16.mxu0 0
    %1035 = vmatmul.mubr.bf16.gmra.mrb[0].mxu0 %v959
    %v1036 = vpop.f32.mrb[0].mxu0
    %v1037 = vadd.f32 %v933, %v1036
    %v1038 = vpop.f32.mrb[0].mxu0
    %v1039 = vpop.f32.mrb[0].mxu0
    %v1040 = vadd.f32 %v933, %v1039
    %v1041 = vpop.f32.mrb[0].mxu0
    %1042 = vmatprep.mubr.bf16.mxu0 0
    %1043 = vmatmul.mubr.bf16.gmra.mrb[0].mxu0 %v962
    %v1044 = vpop.f32.mrb[0].mxu0
    %v1045 = vadd.f32 %v933, %v1044
    %v1046 = vpop.f32.mrb[0].mxu0
    %v1047 = vpop.f32.mrb[0].mxu0
    %v1048 = vadd.f32 %v933, %v1047
    %v1049 = vpop.f32.mrb[0].mxu0
    %1050 = vmatprep.mubr.bf16.mxu0 0
    %1051 = vmatmul.mubr.bf16.gmra.mrb[0].mxu0 %v965
    %v1052 = vpop.f32.mrb[0].mxu0
    %v1053 = vadd.f32 %v933, %v1052
    %v1054 = vpop.f32.mrb[0].mxu0
    %v1055 = vpop.f32.mrb[0].mxu0
    %v1056 = vadd.f32 %v933, %v1055
    %v1057 = vpop.f32.mrb[0].mxu0
    %1058 = vmatprep.mubr.bf16.mxu0 0
    %1059 = vmatmul.mubr.bf16.gmra.mrb[0].mxu0 %v968
    %v1060 = vpop.f32.mrb[0].mxu0
    %v1061 = vadd.f32 %v933, %v1060
    %v1062 = vpop.f32.mrb[0].mxu0
    %v1063 = vpop.f32.mrb[0].mxu0
    %v1064 = vadd.f32 %v933, %v1063
    %v1065 = vpop.f32.mrb[0].mxu0
    %1066 = vdwg.mxu0
    %v1067 = vmax.f32 %v1005, 0.0
    %v1068 = vmax.f32 %v1008, 0.0
    %v1069 = vmax.f32 %v1013, 0.0
    %v1070 = vmax.f32 %v1016, 0.0
    %v1071 = vmax.f32 %v1021, 0.0
    %v1072 = vmax.f32 %v1024, 0.0
    %v1073 = vmax.f32 %v1029, 0.0
    %v1074 = vmax.f32 %v1032, 0.0
    %v1075 = vmax.f32 %v1037, 0.0
    %v1076 = vmax.f32 %v1040, 0.0
    %v1077 = vmax.f32 %v1045, 0.0
    %v1078 = vmax.f32 %v1048, 0.0
    %v1079 = vmax.f32 %v1053, 0.0
    %v1080 = vmax.f32 %v1056, 0.0
    %v1081 = vmax.f32 %v1061, 0.0
    %v1082 = vmax.f32 %v1064, 0.0
    %v1083 = vpack.c.bf16 %v1068, %v1067
    %v1084 = vpack.c.bf16 %v1070, %v1069
    %v1085 = vpack.c.bf16 %v1072, %v1071
    %v1086 = vpack.c.bf16 %v1074, %v1073
    %v1087 = vpack.c.bf16 %v1076, %v1075
    %v1088 = vpack.c.bf16 %v1078, %v1077
    %v1089 = vpack.c.bf16 %v1080, %v1079
    %v1090 = vpack.c.bf16 %v1082, %v1081
    %v1091 = vlaneseq
    %v1092 = vshrl.u32 %v1091, 7
    %v1093 = vsub.s32 1, %v1092
    %v1094 = vrot.slane %v63, %v1093
    %v1099 = vunpack.c.l.b16 %v821
    %v1100 = vunpack.c.l.b16 %v822
    %v1101 = vunpack.c.l.b16 %v823
    %v1102 = vunpack.c.l.b16 %v824
    %v1103 = vpack.c.b16 %v1100, %v1099
    %v1104 = vpack.c.b16 %v1102, %v1101
    %v1108 = vsel %vm352, %v1083, 0
    %v1111 = vsel %vm352, %v1084, 0
    %v1114 = vsel %vm352, %v1085, 0
    %v1117 = vsel %vm352, %v1086, 0
    %v1120 = vsel %vm352, %v1087, 0
    %v1123 = vsel %vm352, %v1088, 0
    %v1126 = vsel %vm352, %v1089, 0
    %v1129 = vsel %vm352, %v1090, 0
    %1131 = vmatprep.subr.bf16.mxu0 0
    %1132 = vmatpush1.bf16.msra.mxu0 %v1103
    %1133 = vmatprep.subr.bf16.mxu0 0
    %1134 = vmatpush1.bf16.msra.mxu0 %v1104
    %1135 = vmatprep.subr.bf16.mxu0 0
    %1136 = vmatpush1.bf16.msra.mxu0 0
    %1137 = vmatprep.subr.bf16.mxu0 0
    %1138 = vmatpush1.bf16.msra.mxu0 0
    %1139 = vmatprep.subr.bf16.mxu0 0
    %1140 = vmatpush1.bf16.msra.mxu0 0
    %1141 = vmatprep.subr.bf16.mxu0 0
    %1142 = vmatpush1.bf16.msra.mxu0 0
    %1143 = vmatprep.subr.bf16.mxu0 0
    %1144 = vmatpush1.bf16.msra.mxu0 0
    %1145 = vmatprep.subr.bf16.mxu0 0
    %1146 = vmatpush1.bf16.msra.mxu0 0
    %1147 = vmatprep.subr.bf16.mxu0 0
    %1148 = vmatpush1.bf16.msra.mxu0 0
    %1149 = vmatprep.subr.bf16.mxu0 0
    %1150 = vmatpush1.bf16.msra.mxu0 0
    %1151 = vmatprep.subr.bf16.mxu0 0
    %1152 = vmatpush1.bf16.msra.mxu0 0
    %1153 = vmatprep.subr.bf16.mxu0 0
    %1154 = vmatpush1.bf16.msra.mxu0 0
    %1155 = vmatprep.subr.bf16.mxu0 0
    %1156 = vmatpush1.bf16.msra.mxu0 0
    %1157 = vmatprep.subr.bf16.mxu0 0
    %1158 = vmatpush1.bf16.msra.mxu0 0
    %1159 = vmatprep.subr.bf16.mxu0 0
    %1160 = vmatpush1.bf16.msra.mxu0 0
    %1161 = vmatprep.subr.bf16.mxu0 0
    %1162 = vmatpush1.bf16.msra.mxu0 0
    %1163 = vmatprep.mubr.bf16.mxu0 0
    %1164 = vmatmul.mubr.bf16.gmra.mrb[0].mxu0 %v1108
    %v1165 = vpop.f32.mrb[0].mxu0
    %v1166 = vadd.f32 %v1094, %v1165
    %v1167 = vpop.f32.mrb[0].mxu0
    %v1168 = vpop.f32.mrb[0].mxu0
    %v1169 = vadd.f32 %v1094, %v1168
    %v1170 = vpop.f32.mrb[0].mxu0
    %1171 = vmatprep.mubr.bf16.mxu0 0
    %1172 = vmatmul.mubr.bf16.gmra.mrb[0].mxu0 %v1111
    %v1173 = vpop.f32.mrb[0].mxu0
    %v1174 = vadd.f32 %v1094, %v1173
    %v1175 = vpop.f32.mrb[0].mxu0
    %v1176 = vpop.f32.mrb[0].mxu0
    %v1177 = vadd.f32 %v1094, %v1176
    %v1178 = vpop.f32.mrb[0].mxu0
    %1179 = vmatprep.mubr.bf16.mxu0 0
    %1180 = vmatmul.mubr.bf16.gmra.mrb[0].mxu0 %v1114
    %v1181 = vpop.f32.mrb[0].mxu0
    %v1182 = vadd.f32 %v1094, %v1181
    %v1183 = vpop.f32.mrb[0].mxu0
    %v1184 = vpop.f32.mrb[0].mxu0
    %v1185 = vadd.f32 %v1094, %v1184
    %v1186 = vpop.f32.mrb[0].mxu0
    %1187 = vmatprep.mubr.bf16.mxu0 0
    %1188 = vmatmul.mubr.bf16.gmra.mrb[0].mxu0 %v1117
    %v1189 = vpop.f32.mrb[0].mxu0
    %v1190 = vadd.f32 %v1094, %v1189
    %v1191 = vpop.f32.mrb[0].mxu0
    %v1192 = vpop.f32.mrb[0].mxu0
    %v1193 = vadd.f32 %v1094, %v1192
    %v1194 = vpop.f32.mrb[0].mxu0
    %1195 = vmatprep.mubr.bf16.mxu0 0
    %1196 = vmatmul.mubr.bf16.gmra.mrb[0].mxu0 %v1120
    %v1197 = vpop.f32.mrb[0].mxu0
    %v1198 = vadd.f32 %v1094, %v1197
    %v1199 = vpop.f32.mrb[0].mxu0
    %v1200 = vpop.f32.mrb[0].mxu0
    %v1201 = vadd.f32 %v1094, %v1200
    %v1202 = vpop.f32.mrb[0].mxu0
    %1203 = vmatprep.mubr.bf16.mxu0 0
    %1204 = vmatmul.mubr.bf16.gmra.mrb[0].mxu0 %v1123
    %v1205 = vpop.f32.mrb[0].mxu0
    %v1206 = vadd.f32 %v1094, %v1205
    %v1207 = vpop.f32.mrb[0].mxu0
    %v1208 = vpop.f32.mrb[0].mxu0
    %v1209 = vadd.f32 %v1094, %v1208
    %v1210 = vpop.f32.mrb[0].mxu0
    %1211 = vmatprep.mubr.bf16.mxu0 0
    %1212 = vmatmul.mubr.bf16.gmra.mrb[0].mxu0 %v1126
    %v1213 = vpop.f32.mrb[0].mxu0
    %v1214 = vadd.f32 %v1094, %v1213
    %v1215 = vpop.f32.mrb[0].mxu0
    %v1216 = vpop.f32.mrb[0].mxu0
    %v1217 = vadd.f32 %v1094, %v1216
    %v1218 = vpop.f32.mrb[0].mxu0
    %1219 = vmatprep.mubr.bf16.mxu0 0
    %1220 = vmatmul.mubr.bf16.gmra.mrb[0].mxu0 %v1129
    %v1221 = vpop.f32.mrb[0].mxu0
    %v1222 = vadd.f32 %v1094, %v1221
    %v1223 = vpop.f32.mrb[0].mxu0
    %v1224 = vpop.f32.mrb[0].mxu0
    %v1225 = vadd.f32 %v1094, %v1224
    %v1226 = vpop.f32.mrb[0].mxu0
    %1227 = vdwg.mxu0
    %v1228 = vmax.f32 %v1166, 0.0
    %v1229 = vmax.f32 %v1169, 0.0
    %v1230 = vmax.f32 %v1174, 0.0
    %v1231 = vmax.f32 %v1177, 0.0
    %v1232 = vmax.f32 %v1182, 0.0
    %v1233 = vmax.f32 %v1185, 0.0
    %v1234 = vmax.f32 %v1190, 0.0
    %v1235 = vmax.f32 %v1193, 0.0
    %v1236 = vmax.f32 %v1198, 0.0
    %v1237 = vmax.f32 %v1201, 0.0
    %v1238 = vmax.f32 %v1206, 0.0
    %v1239 = vmax.f32 %v1209, 0.0
    %v1240 = vmax.f32 %v1214, 0.0
    %v1241 = vmax.f32 %v1217, 0.0
    %v1242 = vmax.f32 %v1222, 0.0
    %v1243 = vmax.f32 %v1225, 0.0
    %v1244 = vpack.c.bf16 %v1229, %v1228
    %v1245 = vpack.c.bf16 %v1231, %v1230
    %v1246 = vpack.c.bf16 %v1233, %v1232
    %v1247 = vpack.c.bf16 %v1235, %v1234
    %v1248 = vpack.c.bf16 %v1237, %v1236
    %v1249 = vpack.c.bf16 %v1239, %v1238
    %v1250 = vpack.c.bf16 %v1241, %v1240
    %v1251 = vpack.c.bf16 %v1243, %v1242
    %1252 = vmatprep.subr.bf16.mxu0 0
    %1253 = vmatpush1.bf16.msra.mxu0 %v1244
    %1254 = vmatprep.subr.bf16.mxu0 0
    %1255 = vmatpush1.bf16.msra.mxu0 %v1245
    %1256 = vmatprep.subr.bf16.mxu0 0
    %1257 = vmatpush1.bf16.msra.mxu0 %v1246
    %1258 = vmatprep.subr.bf16.mxu0 0
    %1259 = vmatpush1.bf16.msra.mxu0 %v1247
    %1260 = vmatprep.subr.bf16.mxu0 0
    %1261 = vmatpush1.bf16.msra.mxu0 %v1248
    %1262 = vmatprep.subr.bf16.mxu0 0
    %1263 = vmatpush1.bf16.msra.mxu0 %v1249
    %1264 = vmatprep.subr.bf16.mxu0 0
    %1265 = vmatpush1.bf16.msra.mxu0 %v1250
    %1266 = vmatprep.subr.bf16.mxu0 0
    %1267 = vmatpush1.bf16.msra.mxu0 %v1251
    %1268 = vmatprep.subr.bf16.mxu0 0
    %1269 = vmatpush1.bf16.msra.mxu0 0
    %1270 = vmatprep.subr.bf16.mxu0 0
    %1271 = vmatpush1.bf16.msra.mxu0 0
    %1272 = vmatprep.subr.bf16.mxu0 0
    %1273 = vmatpush1.bf16.msra.mxu0 0
    %1274 = vmatprep.subr.bf16.mxu0 0
    %1275 = vmatpush1.bf16.msra.mxu0 0
    %1276 = vmatprep.subr.bf16.mxu0 0
    %1277 = vmatpush1.bf16.msra.mxu0 0
    %1278 = vmatprep.subr.bf16.mxu0 0
    %1279 = vmatpush1.bf16.msra.mxu0 0
    %1280 = vmatprep.subr.bf16.mxu0 0
    %1281 = vmatpush1.bf16.msra.mxu0 0
    %1282 = vmatprep.subr.bf16.mxu0 0
    %1283 = vmatpush1.bf16.msra.mxu0 0
    %1284 = vmatprep.mubr.bf16.mxu0 0
    %1285 = vmatmul.mubr.bf16.gmra.mrb[0].mxu0 %v61
    %v1286 = vpop.f32.mrb[0].mxu0
    %v1287 = vadd.f32 0.0, %v1286
    %v1288 = vpop.f32.mrb[0].mxu0
    %v1289 = vpop.f32.mrb[0].mxu0
    %v1290 = vpop.f32.mrb[0].mxu0
    %1291 = vdwg.mxu0
    %v1292 = vpack.c.bf16 %v1287, %v1287
    %s1293 = scalar_lea.vmem %s6, 32
    %v1294 = vld [vmem:[%s1293] sm:$0xf]
    %v1295 = vld [vmem:[%s1293 + $0x4] sm:$0xf]
    %v1296 = vld [vmem:[%s1293 + $0x8] sm:$0xf]
    %v1297 = vld [vmem:[%s1293 + $0xc] sm:$0xf]
    %v1302 = vunpack.c.l.b16 %v1294
    %v1303 = vunpack.c.l.b16 %v1295
    %v1304 = vunpack.c.l.b16 %v1296
    %v1305 = vunpack.c.l.b16 %v1297
    %v1306 = vpack.c.b16 %v1303, %v1302
    %v1307 = vpack.c.b16 %v1305, %v1304
    %v1311 = vsel %vm352, %v1292, 0
    %1313 = vmatprep.subr.bf16.mxu0 0
    %1314 = vmatpush1.bf16.msra.mxu0 %v1306
    %1315 = vmatprep.subr.bf16.mxu0 0
    %1316 = vmatpush1.bf16.msra.mxu0 %v1307
    %1317 = vmatprep.subr.bf16.mxu0 0
    %1318 = vmatpush1.bf16.msra.mxu0 0
    %1319 = vmatprep.subr.bf16.mxu0 0
    %1320 = vmatpush1.bf16.msra.mxu0 0
    %1321 = vmatprep.subr.bf16.mxu0 0
    %1322 = vmatpush1.bf16.msra.mxu0 0
    %1323 = vmatprep.subr.bf16.mxu0 0
    %1324 = vmatpush1.bf16.msra.mxu0 0
    %1325 = vmatprep.subr.bf16.mxu0 0
    %1326 = vmatpush1.bf16.msra.mxu0 0
    %1327 = vmatprep.subr.bf16.mxu0 0
    %1328 = vmatpush1.bf16.msra.mxu0 0
    %1329 = vmatprep.subr.bf16.mxu0 0
    %1330 = vmatpush1.bf16.msra.mxu0 0
    %1331 = vmatprep.subr.bf16.mxu0 0
    %1332 = vmatpush1.bf16.msra.mxu0 0
    %1333 = vmatprep.subr.bf16.mxu0 0
    %1334 = vmatpush1.bf16.msra.mxu0 0
    %1335 = vmatprep.subr.bf16.mxu0 0
    %1336 = vmatpush1.bf16.msra.mxu0 0
    %1337 = vmatprep.subr.bf16.mxu0 0
    %1338 = vmatpush1.bf16.msra.mxu0 0
    %1339 = vmatprep.subr.bf16.mxu0 0
    %1340 = vmatpush1.bf16.msra.mxu0 0
    %1341 = vmatprep.subr.bf16.mxu0 0
    %1342 = vmatpush1.bf16.msra.mxu0 0
    %1343 = vmatprep.subr.bf16.mxu0 0
    %1344 = vmatpush1.bf16.msra.mxu0 0
    %1345 = vmatprep.mubr.bf16.mxu0 0
    %1346 = vmatmul.mubr.bf16.gmra.mrb[0].mxu0 %v1311
    %v1347 = vpop.f32.mrb[0].mxu0
    %v1348 = vadd.f32 0.0, %v1347
    %v1349 = vpop.f32.mrb[0].mxu0
    %v1350 = vpop.f32.mrb[0].mxu0
    %v1351 = vpop.f32.mrb[0].mxu0
    %1352 = vdwg.mxu0
    %v1353 = vadd.f32 %v810, %v1348
    %s1354 = scalar_lea.vmem %s3, 32
    %v1355 = vld [vmem:[%s1354] sm:$0xf]
    %v1356 = vld [vmem:[%s1354 + $0x4] sm:$0xf]
    %v1357 = vld [vmem:[%s1354 + $0x8] sm:$0xf]
    %v1358 = vld [vmem:[%s1354 + $0xc] sm:$0xf]
    %s1359 = scalar_lea.vmem [#allocation2], 32
    %v1360 = vld [vmem:[%s1359] sm:$0xf]
    %v1361 = vld [vmem:[%s1359 + $0x4] sm:$0xf]
    %v1362 = vld [vmem:[%s1359 + $0x8] sm:$0xf]
    %v1363 = vld [vmem:[%s1359 + $0xc] sm:$0xf]
    %1364 = vmatprep.subr.bf16.mxu0 0
    %1365 = vmatpush1.bf16.msra.mxu0 %v1244
    %1366 = vmatprep.subr.bf16.mxu0 0
    %1367 = vmatpush1.bf16.msra.mxu0 %v1245
    %1368 = vmatprep.subr.bf16.mxu0 0
    %1369 = vmatpush1.bf16.msra.mxu0 %v1246
    %1370 = vmatprep.subr.bf16.mxu0 0
    %1371 = vmatpush1.bf16.msra.mxu0 %v1247
    %1372 = vmatprep.subr.bf16.mxu0 0
    %1373 = vmatpush1.bf16.msra.mxu0 %v1248
    %1374 = vmatprep.subr.bf16.mxu0 0
    %1375 = vmatpush1.bf16.msra.mxu0 %v1249
    %1376 = vmatprep.subr.bf16.mxu0 0
    %1377 = vmatpush1.bf16.msra.mxu0 %v1250
    %1378 = vmatprep.subr.bf16.mxu0 0
    %1379 = vmatpush1.bf16.msra.mxu0 %v1251
    %1380 = vmatprep.subr.bf16.mxu0 0
    %1381 = vmatpush1.bf16.msra.mxu0 0
    %1382 = vmatprep.subr.bf16.mxu0 0
    %1383 = vmatpush1.bf16.msra.mxu0 0
    %1384 = vmatprep.subr.bf16.mxu0 0
    %1385 = vmatpush1.bf16.msra.mxu0 0
    %1386 = vmatprep.subr.bf16.mxu0 0
    %1387 = vmatpush1.bf16.msra.mxu0 0
    %1388 = vmatprep.subr.bf16.mxu0 0
    %1389 = vmatpush1.bf16.msra.mxu0 0
    %1390 = vmatprep.subr.bf16.mxu0 0
    %1391 = vmatpush1.bf16.msra.mxu0 0
    %1392 = vmatprep.subr.bf16.mxu0 0
    %1393 = vmatpush1.bf16.msra.mxu0 0
    %1394 = vmatprep.subr.bf16.mxu0 0
    %1395 = vmatpush1.bf16.msra.mxu0 0
    %1396 = vmatprep.mubr.bf16.mxu0 0
    %1397 = vmatmul.mubr.bf16.gmra.mrb[0].mxu0 %v215
    %v1398 = vpop.f32.mrb[0].mxu0
    %v1399 = vadd.f32 0.0, %v1398
    %v1400 = vpop.f32.mrb[0].mxu0
    %v1401 = vpop.f32.mrb[0].mxu0
    %v1402 = vadd.f32 0.0, %v1401
    %v1403 = vpop.f32.mrb[0].mxu0
    %1404 = vmatprep.mubr.bf16.mxu0 0
    %1405 = vmatmul.mubr.bf16.gmra.mrb[0].mxu0 %v216
    %v1406 = vpop.f32.mrb[0].mxu0
    %v1407 = vadd.f32 0.0, %v1406
    %v1408 = vpop.f32.mrb[0].mxu0
    %v1409 = vpop.f32.mrb[0].mxu0
    %v1410 = vadd.f32 0.0, %v1409
    %v1411 = vpop.f32.mrb[0].mxu0
    %1412 = vmatprep.mubr.bf16.mxu0 0
    %1413 = vmatmul.mubr.bf16.gmra.mrb[0].mxu0 %v217
    %v1414 = vpop.f32.mrb[0].mxu0
    %v1415 = vadd.f32 0.0, %v1414
    %v1416 = vpop.f32.mrb[0].mxu0
    %v1417 = vpop.f32.mrb[0].mxu0
    %v1418 = vadd.f32 0.0, %v1417
    %v1419 = vpop.f32.mrb[0].mxu0
    %1420 = vmatprep.mubr.bf16.mxu0 0
    %1421 = vmatmul.mubr.bf16.gmra.mrb[0].mxu0 %v218
    %v1422 = vpop.f32.mrb[0].mxu0
    %v1423 = vadd.f32 0.0, %v1422
    %v1424 = vpop.f32.mrb[0].mxu0
    %v1425 = vpop.f32.mrb[0].mxu0
    %v1426 = vadd.f32 0.0, %v1425
    %v1427 = vpop.f32.mrb[0].mxu0
    %1428 = vmatprep.mubr.bf16.mxu0 0
    %1429 = vmatmul.mubr.bf16.gmra.mrb[0].mxu0 %v219
    %v1430 = vpop.f32.mrb[0].mxu0
    %v1431 = vadd.f32 0.0, %v1430
    %v1432 = vpop.f32.mrb[0].mxu0
    %v1433 = vpop.f32.mrb[0].mxu0
    %v1434 = vadd.f32 0.0, %v1433
    %v1435 = vpop.f32.mrb[0].mxu0
    %1436 = vmatprep.mubr.bf16.mxu0 0
    %1437 = vmatmul.mubr.bf16.gmra.mrb[0].mxu0 %v220
    %v1438 = vpop.f32.mrb[0].mxu0
    %v1439 = vadd.f32 0.0, %v1438
    %v1440 = vpop.f32.mrb[0].mxu0
    %v1441 = vpop.f32.mrb[0].mxu0
    %v1442 = vadd.f32 0.0, %v1441
    %v1443 = vpop.f32.mrb[0].mxu0
    %1444 = vmatprep.mubr.bf16.mxu0 0
    %1445 = vmatmul.mubr.bf16.gmra.mrb[0].mxu0 %v221
    %v1446 = vpop.f32.mrb[0].mxu0
    %v1447 = vadd.f32 0.0, %v1446
    %v1448 = vpop.f32.mrb[0].mxu0
    %v1449 = vpop.f32.mrb[0].mxu0
    %v1450 = vadd.f32 0.0, %v1449
    %v1451 = vpop.f32.mrb[0].mxu0
    %1452 = vmatprep.mubr.bf16.mxu0 0
    %1453 = vmatmul.mubr.bf16.gmra.mrb[0].mxu0 %v222
    %v1454 = vpop.f32.mrb[0].mxu0
    %v1455 = vadd.f32 0.0, %v1454
    %v1456 = vpop.f32.mrb[0].mxu0
    %v1457 = vpop.f32.mrb[0].mxu0
    %v1458 = vadd.f32 0.0, %v1457
    %v1459 = vpop.f32.mrb[0].mxu0
    %1460 = vdwg.mxu0
    %v1461 = vpack.c.bf16 %v1402, %v1399
    %v1462 = vpack.c.bf16 %v1410, %v1407
    %v1463 = vpack.c.bf16 %v1418, %v1415
    %v1464 = vpack.c.bf16 %v1426, %v1423
    %v1465 = vpack.c.bf16 %v1434, %v1431
    %v1466 = vpack.c.bf16 %v1442, %v1439
    %v1467 = vpack.c.bf16 %v1450, %v1447
    %v1468 = vpack.c.bf16 %v1458, %v1455
    %v1469 = vlaneseq
    %v1470 = vshrl.u32 %v1469, 7
    %v1471 = vsub.s32 0, %v1470
    %v1472 = vrot.slane %v64, %v1471
    %v1477 = vunpack.c.l.b16 %v1355
    %v1478 = vunpack.c.l.b16 %v1356
    %v1479 = vunpack.c.l.b16 %v1357
    %v1480 = vunpack.c.l.b16 %v1358
    %v1481 = vpack.c.b16 %v1478, %v1477
    %v1482 = vpack.c.b16 %v1480, %v1479
    %v1486 = vsel %vm352, %v1461, 0
    %v1489 = vsel %vm352, %v1462, 0
    %v1492 = vsel %vm352, %v1463, 0
    %v1495 = vsel %vm352, %v1464, 0
    %v1498 = vsel %vm352, %v1465, 0
    %v1501 = vsel %vm352, %v1466, 0
    %v1504 = vsel %vm352, %v1467, 0
    %v1507 = vsel %vm352, %v1468, 0
    %1509 = vmatprep.subr.bf16.mxu0 0
    %1510 = vmatpush1.bf16.msra.mxu0 %v1481
    %1511 = vmatprep.subr.bf16.mxu0 0
    %1512 = vmatpush1.bf16.msra.mxu0 %v1482
    %1513 = vmatprep.subr.bf16.mxu0 0
    %1514 = vmatpush1.bf16.msra.mxu0 0
    %1515 = vmatprep.subr.bf16.mxu0 0
    %1516 = vmatpush1.bf16.msra.mxu0 0
    %1517 = vmatprep.subr.bf16.mxu0 0
    %1518 = vmatpush1.bf16.msra.mxu0 0
    %1519 = vmatprep.subr.bf16.mxu0 0
    %1520 = vmatpush1.bf16.msra.mxu0 0
    %1521 = vmatprep.subr.bf16.mxu0 0
    %1522 = vmatpush1.bf16.msra.mxu0 0
    %1523 = vmatprep.subr.bf16.mxu0 0
    %1524 = vmatpush1.bf16.msra.mxu0 0
    %1525 = vmatprep.subr.bf16.mxu0 0
    %1526 = vmatpush1.bf16.msra.mxu0 0
    %1527 = vmatprep.subr.bf16.mxu0 0
    %1528 = vmatpush1.bf16.msra.mxu0 0
    %1529 = vmatprep.subr.bf16.mxu0 0
    %1530 = vmatpush1.bf16.msra.mxu0 0
    %1531 = vmatprep.subr.bf16.mxu0 0
    %1532 = vmatpush1.bf16.msra.mxu0 0
    %1533 = vmatprep.subr.bf16.mxu0 0
    %1534 = vmatpush1.bf16.msra.mxu0 0
    %1535 = vmatprep.subr.bf16.mxu0 0
    %1536 = vmatpush1.bf16.msra.mxu0 0
    %1537 = vmatprep.subr.bf16.mxu0 0
    %1538 = vmatpush1.bf16.msra.mxu0 0
    %1539 = vmatprep.subr.bf16.mxu0 0
    %1540 = vmatpush1.bf16.msra.mxu0 0
    %1541 = vmatprep.mubr.bf16.mxu0 0
    %1542 = vmatmul.mubr.bf16.gmra.mrb[0].mxu0 %v1486
    %v1543 = vpop.f32.mrb[0].mxu0
    %v1544 = vadd.f32 %v1472, %v1543
    %v1545 = vpop.f32.mrb[0].mxu0
    %v1546 = vpop.f32.mrb[0].mxu0
    %v1547 = vadd.f32 %v1472, %v1546
    %v1548 = vpop.f32.mrb[0].mxu0
    %1549 = vmatprep.mubr.bf16.mxu0 0
    %1550 = vmatmul.mubr.bf16.gmra.mrb[0].mxu0 %v1489
    %v1551 = vpop.f32.mrb[0].mxu0
    %v1552 = vadd.f32 %v1472, %v1551
    %v1553 = vpop.f32.mrb[0].mxu0
    %v1554 = vpop.f32.mrb[0].mxu0
    %v1555 = vadd.f32 %v1472, %v1554
    %v1556 = vpop.f32.mrb[0].mxu0
    %1557 = vmatprep.mubr.bf16.mxu0 0
    %1558 = vmatmul.mubr.bf16.gmra.mrb[0].mxu0 %v1492
    %v1559 = vpop.f32.mrb[0].mxu0
    %v1560 = vadd.f32 %v1472, %v1559
    %v1561 = vpop.f32.mrb[0].mxu0
    %v1562 = vpop.f32.mrb[0].mxu0
    %v1563 = vadd.f32 %v1472, %v1562
    %v1564 = vpop.f32.mrb[0].mxu0
    %1565 = vmatprep.mubr.bf16.mxu0 0
    %1566 = vmatmul.mubr.bf16.gmra.mrb[0].mxu0 %v1495
    %v1567 = vpop.f32.mrb[0].mxu0
    %v1568 = vadd.f32 %v1472, %v1567
    %v1569 = vpop.f32.mrb[0].mxu0
    %v1570 = vpop.f32.mrb[0].mxu0
    %v1571 = vadd.f32 %v1472, %v1570
    %v1572 = vpop.f32.mrb[0].mxu0
    %1573 = vmatprep.mubr.bf16.mxu0 0
    %1574 = vmatmul.mubr.bf16.gmra.mrb[0].mxu0 %v1498
    %v1575 = vpop.f32.mrb[0].mxu0
    %v1576 = vadd.f32 %v1472, %v1575
    %v1577 = vpop.f32.mrb[0].mxu0
    %v1578 = vpop.f32.mrb[0].mxu0
    %v1579 = vadd.f32 %v1472, %v1578
    %v1580 = vpop.f32.mrb[0].mxu0
    %1581 = vmatprep.mubr.bf16.mxu0 0
    %1582 = vmatmul.mubr.bf16.gmra.mrb[0].mxu0 %v1501
    %v1583 = vpop.f32.mrb[0].mxu0
    %v1584 = vadd.f32 %v1472, %v1583
    %v1585 = vpop.f32.mrb[0].mxu0
    %v1586 = vpop.f32.mrb[0].mxu0
    %v1587 = vadd.f32 %v1472, %v1586
    %v1588 = vpop.f32.mrb[0].mxu0
    %1589 = vmatprep.mubr.bf16.mxu0 0
    %1590 = vmatmul.mubr.bf16.gmra.mrb[0].mxu0 %v1504
    %v1591 = vpop.f32.mrb[0].mxu0
    %v1592 = vadd.f32 %v1472, %v1591
    %v1593 = vpop.f32.mrb[0].mxu0
    %v1594 = vpop.f32.mrb[0].mxu0
    %v1595 = vadd.f32 %v1472, %v1594
    %v1596 = vpop.f32.mrb[0].mxu0
    %1597 = vmatprep.mubr.bf16.mxu0 0
    %1598 = vmatmul.mubr.bf16.gmra.mrb[0].mxu0 %v1507
    %v1599 = vpop.f32.mrb[0].mxu0
    %v1600 = vadd.f32 %v1472, %v1599
    %v1601 = vpop.f32.mrb[0].mxu0
    %v1602 = vpop.f32.mrb[0].mxu0
    %v1603 = vadd.f32 %v1472, %v1602
    %v1604 = vpop.f32.mrb[0].mxu0
    %1605 = vdwg.mxu0
    %v1606 = vmax.f32 %v1544, 0.0
    %v1607 = vmax.f32 %v1547, 0.0
    %v1608 = vmax.f32 %v1552, 0.0
    %v1609 = vmax.f32 %v1555, 0.0
    %v1610 = vmax.f32 %v1560, 0.0
    %v1611 = vmax.f32 %v1563, 0.0
    %v1612 = vmax.f32 %v1568, 0.0
    %v1613 = vmax.f32 %v1571, 0.0
    %v1614 = vmax.f32 %v1576, 0.0
    %v1615 = vmax.f32 %v1579, 0.0
    %v1616 = vmax.f32 %v1584, 0.0
    %v1617 = vmax.f32 %v1587, 0.0
    %v1618 = vmax.f32 %v1592, 0.0
    %v1619 = vmax.f32 %v1595, 0.0
    %v1620 = vmax.f32 %v1600, 0.0
    %v1621 = vmax.f32 %v1603, 0.0
    %v1622 = vpack.c.bf16 %v1607, %v1606
    %v1623 = vpack.c.bf16 %v1609, %v1608
    %v1624 = vpack.c.bf16 %v1611, %v1610
    %v1625 = vpack.c.bf16 %v1613, %v1612
    %v1626 = vpack.c.bf16 %v1615, %v1614
    %v1627 = vpack.c.bf16 %v1617, %v1616
    %v1628 = vpack.c.bf16 %v1619, %v1618
    %v1629 = vpack.c.bf16 %v1621, %v1620
    %v1630 = vlaneseq
    %v1631 = vshrl.u32 %v1630, 7
    %v1632 = vsub.s32 1, %v1631
    %v1633 = vrot.slane %v64, %v1632
    %v1638 = vunpack.c.l.b16 %v1360
    %v1639 = vunpack.c.l.b16 %v1361
    %v1640 = vunpack.c.l.b16 %v1362
    %v1641 = vunpack.c.l.b16 %v1363
    %v1642 = vpack.c.b16 %v1639, %v1638
    %v1643 = vpack.c.b16 %v1641, %v1640
    %v1647 = vsel %vm352, %v1622, 0
    %v1650 = vsel %vm352, %v1623, 0
    %v1653 = vsel %vm352, %v1624, 0
    %v1656 = vsel %vm352, %v1625, 0
    %v1659 = vsel %vm352, %v1626, 0
    %v1662 = vsel %vm352, %v1627, 0
    %v1665 = vsel %vm352, %v1628, 0
    %v1668 = vsel %vm352, %v1629, 0
    %1670 = vmatprep.subr.bf16.mxu0 0
    %1671 = vmatpush1.bf16.msra.mxu0 %v1642
    %1672 = vmatprep.subr.bf16.mxu0 0
    %1673 = vmatpush1.bf16.msra.mxu0 %v1643
    %1674 = vmatprep.subr.bf16.mxu0 0
    %1675 = vmatpush1.bf16.msra.mxu0 0
    %1676 = vmatprep.subr.bf16.mxu0 0
    %1677 = vmatpush1.bf16.msra.mxu0 0
    %1678 = vmatprep.subr.bf16.mxu0 0
    %1679 = vmatpush1.bf16.msra.mxu0 0
    %1680 = vmatprep.subr.bf16.mxu0 0
    %1681 = vmatpush1.bf16.msra.mxu0 0
    %1682 = vmatprep.subr.bf16.mxu0 0
    %1683 = vmatpush1.bf16.msra.mxu0 0
    %1684 = vmatprep.subr.bf16.mxu0 0
    %1685 = vmatpush1.bf16.msra.mxu0 0
    %1686 = vmatprep.subr.bf16.mxu0 0
    %1687 = vmatpush1.bf16.msra.mxu0 0
    %1688 = vmatprep.subr.bf16.mxu0 0
    %1689 = vmatpush1.bf16.msra.mxu0 0
    %1690 = vmatprep.subr.bf16.mxu0 0
    %1691 = vmatpush1.bf16.msra.mxu0 0
    %1692 = vmatprep.subr.bf16.mxu0 0
    %1693 = vmatpush1.bf16.msra.mxu0 0
    %1694 = vmatprep.subr.bf16.mxu0 0
    %1695 = vmatpush1.bf16.msra.mxu0 0
    %1696 = vmatprep.subr.bf16.mxu0 0
    %1697 = vmatpush1.bf16.msra.mxu0 0
    %1698 = vmatprep.subr.bf16.mxu0 0
    %1699 = vmatpush1.bf16.msra.mxu0 0
    %1700 = vmatprep.subr.bf16.mxu0 0
    %1701 = vmatpush1.bf16.msra.mxu0 0
    %1702 = vmatprep.mubr.bf16.mxu0 0
    %1703 = vmatmul.mubr.bf16.gmra.mrb[0].mxu0 %v1647
    %v1704 = vpop.f32.mrb[0].mxu0
    %v1705 = vadd.f32 %v1633, %v1704
    %v1706 = vpop.f32.mrb[0].mxu0
    %v1707 = vpop.f32.mrb[0].mxu0
    %v1708 = vadd.f32 %v1633, %v1707
    %v1709 = vpop.f32.mrb[0].mxu0
    %1710 = vmatprep.mubr.bf16.mxu0 0
    %1711 = vmatmul.mubr.bf16.gmra.mrb[0].mxu0 %v1650
    %v1712 = vpop.f32.mrb[0].mxu0
    %v1713 = vadd.f32 %v1633, %v1712
    %v1714 = vpop.f32.mrb[0].mxu0
    %v1715 = vpop.f32.mrb[0].mxu0
    %v1716 = vadd.f32 %v1633, %v1715
    %v1717 = vpop.f32.mrb[0].mxu0
    %1718 = vmatprep.mubr.bf16.mxu0 0
    %1719 = vmatmul.mubr.bf16.gmra.mrb[0].mxu0 %v1653
    %v1720 = vpop.f32.mrb[0].mxu0
    %v1721 = vadd.f32 %v1633, %v1720
    %v1722 = vpop.f32.mrb[0].mxu0
    %v1723 = vpop.f32.mrb[0].mxu0
    %v1724 = vadd.f32 %v1633, %v1723
    %v1725 = vpop.f32.mrb[0].mxu0
    %1726 = vmatprep.mubr.bf16.mxu0 0
    %1727 = vmatmul.mubr.bf16.gmra.mrb[0].mxu0 %v1656
    %v1728 = vpop.f32.mrb[0].mxu0
    %v1729 = vadd.f32 %v1633, %v1728
    %v1730 = vpop.f32.mrb[0].mxu0
    %v1731 = vpop.f32.mrb[0].mxu0
    %v1732 = vadd.f32 %v1633, %v1731
    %v1733 = vpop.f32.mrb[0].mxu0
    %1734 = vmatprep.mubr.bf16.mxu0 0
    %1735 = vmatmul.mubr.bf16.gmra.mrb[0].mxu0 %v1659
    %v1736 = vpop.f32.mrb[0].mxu0
    %v1737 = vadd.f32 %v1633, %v1736
    %v1738 = vpop.f32.mrb[0].mxu0
    %v1739 = vpop.f32.mrb[0].mxu0
    %v1740 = vadd.f32 %v1633, %v1739
    %v1741 = vpop.f32.mrb[0].mxu0
    %1742 = vmatprep.mubr.bf16.mxu0 0
    %1743 = vmatmul.mubr.bf16.gmra.mrb[0].mxu0 %v1662
    %v1744 = vpop.f32.mrb[0].mxu0
    %v1745 = vadd.f32 %v1633, %v1744
    %v1746 = vpop.f32.mrb[0].mxu0
    %v1747 = vpop.f32.mrb[0].mxu0
    %v1748 = vadd.f32 %v1633, %v1747
    %v1749 = vpop.f32.mrb[0].mxu0
    %1750 = vmatprep.mubr.bf16.mxu0 0
    %1751 = vmatmul.mubr.bf16.gmra.mrb[0].mxu0 %v1665
    %v1752 = vpop.f32.mrb[0].mxu0
    %v1753 = vadd.f32 %v1633, %v1752
    %v1754 = vpop.f32.mrb[0].mxu0
    %v1755 = vpop.f32.mrb[0].mxu0
    %v1756 = vadd.f32 %v1633, %v1755
    %v1757 = vpop.f32.mrb[0].mxu0
    %1758 = vmatprep.mubr.bf16.mxu0 0
    %1759 = vmatmul.mubr.bf16.gmra.mrb[0].mxu0 %v1668
    %v1760 = vpop.f32.mrb[0].mxu0
    %v1761 = vadd.f32 %v1633, %v1760
    %v1762 = vpop.f32.mrb[0].mxu0
    %v1763 = vpop.f32.mrb[0].mxu0
    %v1764 = vadd.f32 %v1633, %v1763
    %v1765 = vpop.f32.mrb[0].mxu0
    %1766 = vdwg.mxu0
    %v1767 = vmax.f32 %v1705, 0.0
    %v1768 = vmax.f32 %v1708, 0.0
    %v1769 = vmax.f32 %v1713, 0.0
    %v1770 = vmax.f32 %v1716, 0.0
    %v1771 = vmax.f32 %v1721, 0.0
    %v1772 = vmax.f32 %v1724, 0.0
    %v1773 = vmax.f32 %v1729, 0.0
    %v1774 = vmax.f32 %v1732, 0.0
    %v1775 = vmax.f32 %v1737, 0.0
    %v1776 = vmax.f32 %v1740, 0.0
    %v1777 = vmax.f32 %v1745, 0.0
    %v1778 = vmax.f32 %v1748, 0.0
    %v1779 = vmax.f32 %v1753, 0.0
    %v1780 = vmax.f32 %v1756, 0.0
    %v1781 = vmax.f32 %v1761, 0.0
    %v1782 = vmax.f32 %v1764, 0.0
    %v1783 = vpack.c.bf16 %v1768, %v1767
    %v1784 = vpack.c.bf16 %v1770, %v1769
    %v1785 = vpack.c.bf16 %v1772, %v1771
    %v1786 = vpack.c.bf16 %v1774, %v1773
    %v1787 = vpack.c.bf16 %v1776, %v1775
    %v1788 = vpack.c.bf16 %v1778, %v1777
    %v1789 = vpack.c.bf16 %v1780, %v1779
    %v1790 = vpack.c.bf16 %v1782, %v1781
    %1791 = vmatprep.subr.bf16.mxu0 0
    %1792 = vmatpush1.bf16.msra.mxu0 %v1783
    %1793 = vmatprep.subr.bf16.mxu0 0
    %1794 = vmatpush1.bf16.msra.mxu0 %v1784
    %1795 = vmatprep.subr.bf16.mxu0 0
    %1796 = vmatpush1.bf16.msra.mxu0 %v1785
    %1797 = vmatprep.subr.bf16.mxu0 0
    %1798 = vmatpush1.bf16.msra.mxu0 %v1786
    %1799 = vmatprep.subr.bf16.mxu0 0
    %1800 = vmatpush1.bf16.msra.mxu0 %v1787
    %1801 = vmatprep.subr.bf16.mxu0 0
    %1802 = vmatpush1.bf16.msra.mxu0 %v1788
    %1803 = vmatprep.subr.bf16.mxu0 0
    %1804 = vmatpush1.bf16.msra.mxu0 %v1789
    %1805 = vmatprep.subr.bf16.mxu0 0
    %1806 = vmatpush1.bf16.msra.mxu0 %v1790
    %1807 = vmatprep.subr.bf16.mxu0 0
    %1808 = vmatpush1.bf16.msra.mxu0 0
    %1809 = vmatprep.subr.bf16.mxu0 0
    %1810 = vmatpush1.bf16.msra.mxu0 0
    %1811 = vmatprep.subr.bf16.mxu0 0
    %1812 = vmatpush1.bf16.msra.mxu0 0
    %1813 = vmatprep.subr.bf16.mxu0 0
    %1814 = vmatpush1.bf16.msra.mxu0 0
    %1815 = vmatprep.subr.bf16.mxu0 0
    %1816 = vmatpush1.bf16.msra.mxu0 0
    %1817 = vmatprep.subr.bf16.mxu0 0
    %1818 = vmatpush1.bf16.msra.mxu0 0
    %1819 = vmatprep.subr.bf16.mxu0 0
    %1820 = vmatpush1.bf16.msra.mxu0 0
    %1821 = vmatprep.subr.bf16.mxu0 0
    %1822 = vmatpush1.bf16.msra.mxu0 0
    %1823 = vmatprep.mubr.bf16.mxu0 0
    %1824 = vmatmul.mubr.bf16.gmra.mrb[0].mxu0 %v61
    %v1825 = vpop.f32.mrb[0].mxu0
    %v1826 = vadd.f32 0.0, %v1825
    %v1827 = vpop.f32.mrb[0].mxu0
    %v1828 = vpop.f32.mrb[0].mxu0
    %v1829 = vpop.f32.mrb[0].mxu0
    %1830 = vdwg.mxu0
    %v1831 = vpack.c.bf16 %v1826, %v1826
    %s1832 = scalar_lea.vmem %s6, 48
    %v1833 = vld [vmem:[%s1832] sm:$0xf]
    %v1834 = vld [vmem:[%s1832 + $0x4] sm:$0xf]
    %v1835 = vld [vmem:[%s1832 + $0x8] sm:$0xf]
    %v1836 = vld [vmem:[%s1832 + $0xc] sm:$0xf]
    %v1841 = vunpack.c.l.b16 %v1833
    %v1842 = vunpack.c.l.b16 %v1834
    %v1843 = vunpack.c.l.b16 %v1835
    %v1844 = vunpack.c.l.b16 %v1836
    %v1845 = vpack.c.b16 %v1842, %v1841
    %v1846 = vpack.c.b16 %v1844, %v1843
    %v1850 = vsel %vm352, %v1831, 0
    %1852 = vmatprep.subr.bf16.mxu0 0
    %1853 = vmatpush1.bf16.msra.mxu0 %v1845
    %1854 = vmatprep.subr.bf16.mxu0 0
    %1855 = vmatpush1.bf16.msra.mxu0 %v1846
    %1856 = vmatprep.subr.bf16.mxu0 0
    %1857 = vmatpush1.bf16.msra.mxu0 0
    %1858 = vmatprep.subr.bf16.mxu0 0
    %1859 = vmatpush1.bf16.msra.mxu0 0
    %1860 = vmatprep.subr.bf16.mxu0 0
    %1861 = vmatpush1.bf16.msra.mxu0 0
    %1862 = vmatprep.subr.bf16.mxu0 0
    %1863 = vmatpush1.bf16.msra.mxu0 0
    %1864 = vmatprep.subr.bf16.mxu0 0
    %1865 = vmatpush1.bf16.msra.mxu0 0
    %1866 = vmatprep.subr.bf16.mxu0 0
    %1867 = vmatpush1.bf16.msra.mxu0 0
    %1868 = vmatprep.subr.bf16.mxu0 0
    %1869 = vmatpush1.bf16.msra.mxu0 0
    %1870 = vmatprep.subr.bf16.mxu0 0
    %1871 = vmatpush1.bf16.msra.mxu0 0
    %1872 = vmatprep.subr.bf16.mxu0 0
    %1873 = vmatpush1.bf16.msra.mxu0 0
    %1874 = vmatprep.subr.bf16.mxu0 0
    %1875 = vmatpush1.bf16.msra.mxu0 0
    %1876 = vmatprep.subr.bf16.mxu0 0
    %1877 = vmatpush1.bf16.msra.mxu0 0
    %1878 = vmatprep.subr.bf16.mxu0 0
    %1879 = vmatpush1.bf16.msra.mxu0 0
    %1880 = vmatprep.subr.bf16.mxu0 0
    %1881 = vmatpush1.bf16.msra.mxu0 0
    %1882 = vmatprep.subr.bf16.mxu0 0
    %1883 = vmatpush1.bf16.msra.mxu0 0
    %1884 = vmatprep.mubr.bf16.mxu0 0
    %1885 = vmatmul.mubr.bf16.gmra.mrb[0].mxu0 %v1850
    %v1886 = vpop.f32.mrb[0].mxu0
    %v1887 = vadd.f32 0.0, %v1886
    %v1888 = vpop.f32.mrb[0].mxu0
    %v1889 = vpop.f32.mrb[0].mxu0
    %v1890 = vpop.f32.mrb[0].mxu0
    %1891 = vdwg.mxu0
    %v1892 = vadd.f32 %v1353, %v1887
    %s1893 = scalar_lea.vmem %s3, 48
    %v1894 = vld [vmem:[%s1893] sm:$0xf]
    %v1895 = vld [vmem:[%s1893 + $0x4] sm:$0xf]
    %v1896 = vld [vmem:[%s1893 + $0x8] sm:$0xf]
    %v1897 = vld [vmem:[%s1893 + $0xc] sm:$0xf]
    %s1898 = scalar_lea.vmem [#allocation2], 48
    %v1899 = vld [vmem:[%s1898] sm:$0xf]
    %v1900 = vld [vmem:[%s1898 + $0x4] sm:$0xf]
    %v1901 = vld [vmem:[%s1898 + $0x8] sm:$0xf]
    %v1902 = vld [vmem:[%s1898 + $0xc] sm:$0xf]
    %1903 = vmatprep.subr.bf16.mxu0 0
    %1904 = vmatpush1.bf16.msra.mxu0 %v1783
    %1905 = vmatprep.subr.bf16.mxu0 0
    %1906 = vmatpush1.bf16.msra.mxu0 %v1784
    %1907 = vmatprep.subr.bf16.mxu0 0
    %1908 = vmatpush1.bf16.msra.mxu0 %v1785
    %1909 = vmatprep.subr.bf16.mxu0 0
    %1910 = vmatpush1.bf16.msra.mxu0 %v1786
    %1911 = vmatprep.subr.bf16.mxu0 0
    %1912 = vmatpush1.bf16.msra.mxu0 %v1787
    %1913 = vmatprep.subr.bf16.mxu0 0
    %1914 = vmatpush1.bf16.msra.mxu0 %v1788
    %1915 = vmatprep.subr.bf16.mxu0 0
    %1916 = vmatpush1.bf16.msra.mxu0 %v1789
    %1917 = vmatprep.subr.bf16.mxu0 0
    %1918 = vmatpush1.bf16.msra.mxu0 %v1790
    %1919 = vmatprep.subr.bf16.mxu0 0
    %1920 = vmatpush1.bf16.msra.mxu0 0
    %1921 = vmatprep.subr.bf16.mxu0 0
    %1922 = vmatpush1.bf16.msra.mxu0 0
    %1923 = vmatprep.subr.bf16.mxu0 0
    %1924 = vmatpush1.bf16.msra.mxu0 0
    %1925 = vmatprep.subr.bf16.mxu0 0
    %1926 = vmatpush1.bf16.msra.mxu0 0
    %1927 = vmatprep.subr.bf16.mxu0 0
    %1928 = vmatpush1.bf16.msra.mxu0 0
    %1929 = vmatprep.subr.bf16.mxu0 0
    %1930 = vmatpush1.bf16.msra.mxu0 0
    %1931 = vmatprep.subr.bf16.mxu0 0
    %1932 = vmatpush1.bf16.msra.mxu0 0
    %1933 = vmatprep.subr.bf16.mxu0 0
    %1934 = vmatpush1.bf16.msra.mxu0 0
    %1935 = vmatprep.mubr.bf16.mxu0 0
    %1936 = vmatmul.mubr.bf16.gmra.mrb[0].mxu0 %v215
    %v1937 = vpop.f32.mrb[0].mxu0
    %v1938 = vadd.f32 0.0, %v1937
    %v1939 = vpop.f32.mrb[0].mxu0
    %v1940 = vpop.f32.mrb[0].mxu0
    %v1941 = vadd.f32 0.0, %v1940
    %v1942 = vpop.f32.mrb[0].mxu0
    %1943 = vmatprep.mubr.bf16.mxu0 0
    %1944 = vmatmul.mubr.bf16.gmra.mrb[0].mxu0 %v216
    %v1945 = vpop.f32.mrb[0].mxu0
    %v1946 = vadd.f32 0.0, %v1945
    %v1947 = vpop.f32.mrb[0].mxu0
    %v1948 = vpop.f32.mrb[0].mxu0
    %v1949 = vadd.f32 0.0, %v1948
    %v1950 = vpop.f32.mrb[0].mxu0
    %1951 = vmatprep.mubr.bf16.mxu0 0
    %1952 = vmatmul.mubr.bf16.gmra.mrb[0].mxu0 %v217
    %v1953 = vpop.f32.mrb[0].mxu0
    %v1954 = vadd.f32 0.0, %v1953
    %v1955 = vpop.f32.mrb[0].mxu0
    %v1956 = vpop.f32.mrb[0].mxu0
    %v1957 = vadd.f32 0.0, %v1956
    %v1958 = vpop.f32.mrb[0].mxu0
    %1959 = vmatprep.mubr.bf16.mxu0 0
    %1960 = vmatmul.mubr.bf16.gmra.mrb[0].mxu0 %v218
    %v1961 = vpop.f32.mrb[0].mxu0
    %v1962 = vadd.f32 0.0, %v1961
    %v1963 = vpop.f32.mrb[0].mxu0
    %v1964 = vpop.f32.mrb[0].mxu0
    %v1965 = vadd.f32 0.0, %v1964
    %v1966 = vpop.f32.mrb[0].mxu0
    %1967 = vmatprep.mubr.bf16.mxu0 0
    %1968 = vmatmul.mubr.bf16.gmra.mrb[0].mxu0 %v219
    %v1969 = vpop.f32.mrb[0].mxu0
    %v1970 = vadd.f32 0.0, %v1969
    %v1971 = vpop.f32.mrb[0].mxu0
    %v1972 = vpop.f32.mrb[0].mxu0
    %v1973 = vadd.f32 0.0, %v1972
    %v1974 = vpop.f32.mrb[0].mxu0
    %1975 = vmatprep.mubr.bf16.mxu0 0
    %1976 = vmatmul.mubr.bf16.gmra.mrb[0].mxu0 %v220
    %v1977 = vpop.f32.mrb[0].mxu0
    %v1978 = vadd.f32 0.0, %v1977
    %v1979 = vpop.f32.mrb[0].mxu0
    %v1980 = vpop.f32.mrb[0].mxu0
    %v1981 = vadd.f32 0.0, %v1980
    %v1982 = vpop.f32.mrb[0].mxu0
    %1983 = vmatprep.mubr.bf16.mxu0 0
    %1984 = vmatmul.mubr.bf16.gmra.mrb[0].mxu0 %v221
    %v1985 = vpop.f32.mrb[0].mxu0
    %v1986 = vadd.f32 0.0, %v1985
    %v1987 = vpop.f32.mrb[0].mxu0
    %v1988 = vpop.f32.mrb[0].mxu0
    %v1989 = vadd.f32 0.0, %v1988
    %v1990 = vpop.f32.mrb[0].mxu0
    %1991 = vmatprep.mubr.bf16.mxu0 0
    %1992 = vmatmul.mubr.bf16.gmra.mrb[0].mxu0 %v222
    %v1993 = vpop.f32.mrb[0].mxu0
    %v1994 = vadd.f32 0.0, %v1993
    %v1995 = vpop.f32.mrb[0].mxu0
    %v1996 = vpop.f32.mrb[0].mxu0
    %v1997 = vadd.f32 0.0, %v1996
    %v1998 = vpop.f32.mrb[0].mxu0
    %1999 = vdwg.mxu0
    %v2000 = vpack.c.bf16 %v1941, %v1938
    %v2001 = vpack.c.bf16 %v1949, %v1946
    %v2002 = vpack.c.bf16 %v1957, %v1954
    %v2003 = vpack.c.bf16 %v1965, %v1962
    %v2004 = vpack.c.bf16 %v1973, %v1970
    %v2005 = vpack.c.bf16 %v1981, %v1978
    %v2006 = vpack.c.bf16 %v1989, %v1986
    %v2007 = vpack.c.bf16 %v1997, %v1994
    %v2008 = vlaneseq
    %v2009 = vshrl.u32 %v2008, 7
    %v2010 = vsub.s32 0, %v2009
    %v2011 = vrot.slane %v65, %v2010
    %v2016 = vunpack.c.l.b16 %v1894
    %v2017 = vunpack.c.l.b16 %v1895
    %v2018 = vunpack.c.l.b16 %v1896
    %v2019 = vunpack.c.l.b16 %v1897
    %v2020 = vpack.c.b16 %v2017, %v2016
    %v2021 = vpack.c.b16 %v2019, %v2018
    %v2025 = vsel %vm352, %v2000, 0
    %v2028 = vsel %vm352, %v2001, 0
    %v2031 = vsel %vm352, %v2002, 0
    %v2034 = vsel %vm352, %v2003, 0
    %v2037 = vsel %vm352, %v2004, 0
    %v2040 = vsel %vm352, %v2005, 0
    %v2043 = vsel %vm352, %v2006, 0
    %v2046 = vsel %vm352, %v2007, 0
    %2048 = vmatprep.subr.bf16.mxu0 0
    %2049 = vmatpush1.bf16.msra.mxu0 %v2020
    %2050 = vmatprep.subr.bf16.mxu0 0
    %2051 = vmatpush1.bf16.msra.mxu0 %v2021
    %2052 = vmatprep.subr.bf16.mxu0 0
    %2053 = vmatpush1.bf16.msra.mxu0 0
    %2054 = vmatprep.subr.bf16.mxu0 0
    %2055 = vmatpush1.bf16.msra.mxu0 0
    %2056 = vmatprep.subr.bf16.mxu0 0
    %2057 = vmatpush1.bf16.msra.mxu0 0
    %2058 = vmatprep.subr.bf16.mxu0 0
    %2059 = vmatpush1.bf16.msra.mxu0 0
    %2060 = vmatprep.subr.bf16.mxu0 0
    %2061 = vmatpush1.bf16.msra.mxu0 0
    %2062 = vmatprep.subr.bf16.mxu0 0
    %2063 = vmatpush1.bf16.msra.mxu0 0
    %2064 = vmatprep.subr.bf16.mxu0 0
    %2065 = vmatpush1.bf16.msra.mxu0 0
    %2066 = vmatprep.subr.bf16.mxu0 0
    %2067 = vmatpush1.bf16.msra.mxu0 0
    %2068 = vmatprep.subr.bf16.mxu0 0
    %2069 = vmatpush1.bf16.msra.mxu0 0
    %2070 = vmatprep.subr.bf16.mxu0 0
    %2071 = vmatpush1.bf16.msra.mxu0 0
    %2072 = vmatprep.subr.bf16.mxu0 0
    %2073 = vmatpush1.bf16.msra.mxu0 0
    %2074 = vmatprep.subr.bf16.mxu0 0
    %2075 = vmatpush1.bf16.msra.mxu0 0
    %2076 = vmatprep.subr.bf16.mxu0 0
    %2077 = vmatpush1.bf16.msra.mxu0 0
    %2078 = vmatprep.subr.bf16.mxu0 0
    %2079 = vmatpush1.bf16.msra.mxu0 0
    %2080 = vmatprep.mubr.bf16.mxu0 0
    %2081 = vmatmul.mubr.bf16.gmra.mrb[0].mxu0 %v2025
    %v2082 = vpop.f32.mrb[0].mxu0
    %v2083 = vadd.f32 %v2011, %v2082
    %v2084 = vpop.f32.mrb[0].mxu0
    %v2085 = vpop.f32.mrb[0].mxu0
    %v2086 = vadd.f32 %v2011, %v2085
    %v2087 = vpop.f32.mrb[0].mxu0
    %2088 = vmatprep.mubr.bf16.mxu0 0
    %2089 = vmatmul.mubr.bf16.gmra.mrb[0].mxu0 %v2028
    %v2090 = vpop.f32.mrb[0].mxu0
    %v2091 = vadd.f32 %v2011, %v2090
    %v2092 = vpop.f32.mrb[0].mxu0
    %v2093 = vpop.f32.mrb[0].mxu0
    %v2094 = vadd.f32 %v2011, %v2093
    %v2095 = vpop.f32.mrb[0].mxu0
    %2096 = vmatprep.mubr.bf16.mxu0 0
    %2097 = vmatmul.mubr.bf16.gmra.mrb[0].mxu0 %v2031
    %v2098 = vpop.f32.mrb[0].mxu0
    %v2099 = vadd.f32 %v2011, %v2098
    %v2100 = vpop.f32.mrb[0].mxu0
    %v2101 = vpop.f32.mrb[0].mxu0
    %v2102 = vadd.f32 %v2011, %v2101
    %v2103 = vpop.f32.mrb[0].mxu0
    %2104 = vmatprep.mubr.bf16.mxu0 0
    %2105 = vmatmul.mubr.bf16.gmra.mrb[0].mxu0 %v2034
    %v2106 = vpop.f32.mrb[0].mxu0
    %v2107 = vadd.f32 %v2011, %v2106
    %v2108 = vpop.f32.mrb[0].mxu0
    %v2109 = vpop.f32.mrb[0].mxu0
    %v2110 = vadd.f32 %v2011, %v2109
    %v2111 = vpop.f32.mrb[0].mxu0
    %2112 = vmatprep.mubr.bf16.mxu0 0
    %2113 = vmatmul.mubr.bf16.gmra.mrb[0].mxu0 %v2037
    %v2114 = vpop.f32.mrb[0].mxu0
    %v2115 = vadd.f32 %v2011, %v2114
    %v2116 = vpop.f32.mrb[0].mxu0
    %v2117 = vpop.f32.mrb[0].mxu0
    %v2118 = vadd.f32 %v2011, %v2117
    %v2119 = vpop.f32.mrb[0].mxu0
    %2120 = vmatprep.mubr.bf16.mxu0 0
    %2121 = vmatmul.mubr.bf16.gmra.mrb[0].mxu0 %v2040
    %v2122 = vpop.f32.mrb[0].mxu0
    %v2123 = vadd.f32 %v2011, %v2122
    %v2124 = vpop.f32.mrb[0].mxu0
    %v2125 = vpop.f32.mrb[0].mxu0
    %v2126 = vadd.f32 %v2011, %v2125
    %v2127 = vpop.f32.mrb[0].mxu0
    %2128 = vmatprep.mubr.bf16.mxu0 0
    %2129 = vmatmul.mubr.bf16.gmra.mrb[0].mxu0 %v2043
    %v2130 = vpop.f32.mrb[0].mxu0
    %v2131 = vadd.f32 %v2011, %v2130
    %v2132 = vpop.f32.mrb[0].mxu0
    %v2133 = vpop.f32.mrb[0].mxu0
    %v2134 = vadd.f32 %v2011, %v2133
    %v2135 = vpop.f32.mrb[0].mxu0
    %2136 = vmatprep.mubr.bf16.mxu0 0
    %2137 = vmatmul.mubr.bf16.gmra.mrb[0].mxu0 %v2046
    %v2138 = vpop.f32.mrb[0].mxu0
    %v2139 = vadd.f32 %v2011, %v2138
    %v2140 = vpop.f32.mrb[0].mxu0
    %v2141 = vpop.f32.mrb[0].mxu0
    %v2142 = vadd.f32 %v2011, %v2141
    %v2143 = vpop.f32.mrb[0].mxu0
    %2144 = vdwg.mxu0
    %v2145 = vmax.f32 %v2083, 0.0
    %v2146 = vmax.f32 %v2086, 0.0
    %v2147 = vmax.f32 %v2091, 0.0
    %v2148 = vmax.f32 %v2094, 0.0
    %v2149 = vmax.f32 %v2099, 0.0
    %v2150 = vmax.f32 %v2102, 0.0
    %v2151 = vmax.f32 %v2107, 0.0
    %v2152 = vmax.f32 %v2110, 0.0
    %v2153 = vmax.f32 %v2115, 0.0
    %v2154 = vmax.f32 %v2118, 0.0
    %v2155 = vmax.f32 %v2123, 0.0
    %v2156 = vmax.f32 %v2126, 0.0
    %v2157 = vmax.f32 %v2131, 0.0
    %v2158 = vmax.f32 %v2134, 0.0
    %v2159 = vmax.f32 %v2139, 0.0
    %v2160 = vmax.f32 %v2142, 0.0
    %v2161 = vpack.c.bf16 %v2146, %v2145
    %v2162 = vpack.c.bf16 %v2148, %v2147
    %v2163 = vpack.c.bf16 %v2150, %v2149
    %v2164 = vpack.c.bf16 %v2152, %v2151
    %v2165 = vpack.c.bf16 %v2154, %v2153
    %v2166 = vpack.c.bf16 %v2156, %v2155
    %v2167 = vpack.c.bf16 %v2158, %v2157
    %v2168 = vpack.c.bf16 %v2160, %v2159
    %v2169 = vlaneseq
    %v2170 = vshrl.u32 %v2169, 7
    %v2171 = vsub.s32 1, %v2170
    %v2172 = vrot.slane %v65, %v2171
    %v2177 = vunpack.c.l.b16 %v1899
    %v2178 = vunpack.c.l.b16 %v1900
    %v2179 = vunpack.c.l.b16 %v1901
    %v2180 = vunpack.c.l.b16 %v1902
    %v2181 = vpack.c.b16 %v2178, %v2177
    %v2182 = vpack.c.b16 %v2180, %v2179
    %v2186 = vsel %vm352, %v2161, 0
    %v2189 = vsel %vm352, %v2162, 0
    %v2192 = vsel %vm352, %v2163, 0
    %v2195 = vsel %vm352, %v2164, 0
    %v2198 = vsel %vm352, %v2165, 0
    %v2201 = vsel %vm352, %v2166, 0
    %v2204 = vsel %vm352, %v2167, 0
    %v2207 = vsel %vm352, %v2168, 0
    %2209 = vmatprep.subr.bf16.mxu0 0
    %2210 = vmatpush1.bf16.msra.mxu0 %v2181
    %2211 = vmatprep.subr.bf16.mxu0 0
    %2212 = vmatpush1.bf16.msra.mxu0 %v2182
    %2213 = vmatprep.subr.bf16.mxu0 0
    %2214 = vmatpush1.bf16.msra.mxu0 0
    %2215 = vmatprep.subr.bf16.mxu0 0
    %2216 = vmatpush1.bf16.msra.mxu0 0
    %2217 = vmatprep.subr.bf16.mxu0 0
    %2218 = vmatpush1.bf16.msra.mxu0 0
    %2219 = vmatprep.subr.bf16.mxu0 0
    %2220 = vmatpush1.bf16.msra.mxu0 0
    %2221 = vmatprep.subr.bf16.mxu0 0
    %2222 = vmatpush1.bf16.msra.mxu0 0
    %2223 = vmatprep.subr.bf16.mxu0 0
    %2224 = vmatpush1.bf16.msra.mxu0 0
    %2225 = vmatprep.subr.bf16.mxu0 0
    %2226 = vmatpush1.bf16.msra.mxu0 0
    %2227 = vmatprep.subr.bf16.mxu0 0
    %2228 = vmatpush1.bf16.msra.mxu0 0
    %2229 = vmatprep.subr.bf16.mxu0 0
    %2230 = vmatpush1.bf16.msra.mxu0 0
    %2231 = vmatprep.subr.bf16.mxu0 0
    %2232 = vmatpush1.bf16.msra.mxu0 0
    %2233 = vmatprep.subr.bf16.mxu0 0
    %2234 = vmatpush1.bf16.msra.mxu0 0
    %2235 = vmatprep.subr.bf16.mxu0 0
    %2236 = vmatpush1.bf16.msra.mxu0 0
    %2237 = vmatprep.subr.bf16.mxu0 0
    %2238 = vmatpush1.bf16.msra.mxu0 0
    %2239 = vmatprep.subr.bf16.mxu0 0
    %2240 = vmatpush1.bf16.msra.mxu0 0
    %2241 = vmatprep.mubr.bf16.mxu0 0
    %2242 = vmatmul.mubr.bf16.gmra.mrb[0].mxu0 %v2186
    %v2243 = vpop.f32.mrb[0].mxu0
    %v2244 = vadd.f32 %v2172, %v2243
    %v2245 = vpop.f32.mrb[0].mxu0
    %v2246 = vpop.f32.mrb[0].mxu0
    %v2247 = vadd.f32 %v2172, %v2246
    %v2248 = vpop.f32.mrb[0].mxu0
    %2249 = vmatprep.mubr.bf16.mxu0 0
    %2250 = vmatmul.mubr.bf16.gmra.mrb[0].mxu0 %v2189
    %v2251 = vpop.f32.mrb[0].mxu0
    %v2252 = vadd.f32 %v2172, %v2251
    %v2253 = vpop.f32.mrb[0].mxu0
    %v2254 = vpop.f32.mrb[0].mxu0
    %v2255 = vadd.f32 %v2172, %v2254
    %v2256 = vpop.f32.mrb[0].mxu0
    %2257 = vmatprep.mubr.bf16.mxu0 0
    %2258 = vmatmul.mubr.bf16.gmra.mrb[0].mxu0 %v2192
    %v2259 = vpop.f32.mrb[0].mxu0
    %v2260 = vadd.f32 %v2172, %v2259
    %v2261 = vpop.f32.mrb[0].mxu0
    %v2262 = vpop.f32.mrb[0].mxu0
    %v2263 = vadd.f32 %v2172, %v2262
    %v2264 = vpop.f32.mrb[0].mxu0
    %2265 = vmatprep.mubr.bf16.mxu0 0
    %2266 = vmatmul.mubr.bf16.gmra.mrb[0].mxu0 %v2195
    %v2267 = vpop.f32.mrb[0].mxu0
    %v2268 = vadd.f32 %v2172, %v2267
    %v2269 = vpop.f32.mrb[0].mxu0
    %v2270 = vpop.f32.mrb[0].mxu0
    %v2271 = vadd.f32 %v2172, %v2270
    %v2272 = vpop.f32.mrb[0].mxu0
    %2273 = vmatprep.mubr.bf16.mxu0 0
    %2274 = vmatmul.mubr.bf16.gmra.mrb[0].mxu0 %v2198
    %v2275 = vpop.f32.mrb[0].mxu0
    %v2276 = vadd.f32 %v2172, %v2275
    %v2277 = vpop.f32.mrb[0].mxu0
    %v2278 = vpop.f32.mrb[0].mxu0
    %v2279 = vadd.f32 %v2172, %v2278
    %v2280 = vpop.f32.mrb[0].mxu0
    %2281 = vmatprep.mubr.bf16.mxu0 0
    %2282 = vmatmul.mubr.bf16.gmra.mrb[0].mxu0 %v2201
    %v2283 = vpop.f32.mrb[0].mxu0
    %v2284 = vadd.f32 %v2172, %v2283
    %v2285 = vpop.f32.mrb[0].mxu0
    %v2286 = vpop.f32.mrb[0].mxu0
    %v2287 = vadd.f32 %v2172, %v2286
    %v2288 = vpop.f32.mrb[0].mxu0
    %2289 = vmatprep.mubr.bf16.mxu0 0
    %2290 = vmatmul.mubr.bf16.gmra.mrb[0].mxu0 %v2204
    %v2291 = vpop.f32.mrb[0].mxu0
    %v2292 = vadd.f32 %v2172, %v2291
    %v2293 = vpop.f32.mrb[0].mxu0
    %v2294 = vpop.f32.mrb[0].mxu0
    %v2295 = vadd.f32 %v2172, %v2294
    %v2296 = vpop.f32.mrb[0].mxu0
    %2297 = vmatprep.mubr.bf16.mxu0 0
    %2298 = vmatmul.mubr.bf16.gmra.mrb[0].mxu0 %v2207
    %v2299 = vpop.f32.mrb[0].mxu0
    %v2300 = vadd.f32 %v2172, %v2299
    %v2301 = vpop.f32.mrb[0].mxu0
    %v2302 = vpop.f32.mrb[0].mxu0
    %v2303 = vadd.f32 %v2172, %v2302
    %v2304 = vpop.f32.mrb[0].mxu0
    %2305 = vdwg.mxu0
    %v2306 = vmax.f32 %v2244, 0.0
    %v2307 = vmax.f32 %v2247, 0.0
    %v2308 = vmax.f32 %v2252, 0.0
    %v2309 = vmax.f32 %v2255, 0.0
    %v2310 = vmax.f32 %v2260, 0.0
    %v2311 = vmax.f32 %v2263, 0.0
    %v2312 = vmax.f32 %v2268, 0.0
    %v2313 = vmax.f32 %v2271, 0.0
    %v2314 = vmax.f32 %v2276, 0.0
    %v2315 = vmax.f32 %v2279, 0.0
    %v2316 = vmax.f32 %v2284, 0.0
    %v2317 = vmax.f32 %v2287, 0.0
    %v2318 = vmax.f32 %v2292, 0.0
    %v2319 = vmax.f32 %v2295, 0.0
    %v2320 = vmax.f32 %v2300, 0.0
    %v2321 = vmax.f32 %v2303, 0.0
    %v2322 = vpack.c.bf16 %v2307, %v2306
    %v2323 = vpack.c.bf16 %v2309, %v2308
    %v2324 = vpack.c.bf16 %v2311, %v2310
    %v2325 = vpack.c.bf16 %v2313, %v2312
    %v2326 = vpack.c.bf16 %v2315, %v2314
    %v2327 = vpack.c.bf16 %v2317, %v2316
    %v2328 = vpack.c.bf16 %v2319, %v2318
    %v2329 = vpack.c.bf16 %v2321, %v2320
    %2330 = vmatprep.subr.bf16.mxu0 0
    %2331 = vmatpush1.bf16.msra.mxu0 %v2322
    %2332 = vmatprep.subr.bf16.mxu0 0
    %2333 = vmatpush1.bf16.msra.mxu0 %v2323
    %2334 = vmatprep.subr.bf16.mxu0 0
    %2335 = vmatpush1.bf16.msra.mxu0 %v2324
    %2336 = vmatprep.subr.bf16.mxu0 0
    %2337 = vmatpush1.bf16.msra.mxu0 %v2325
    %2338 = vmatprep.subr.bf16.mxu0 0
    %2339 = vmatpush1.bf16.msra.mxu0 %v2326
    %2340 = vmatprep.subr.bf16.mxu0 0
    %2341 = vmatpush1.bf16.msra.mxu0 %v2327
    %2342 = vmatprep.subr.bf16.mxu0 0
    %2343 = vmatpush1.bf16.msra.mxu0 %v2328
    %2344 = vmatprep.subr.bf16.mxu0 0
    %2345 = vmatpush1.bf16.msra.mxu0 %v2329
    %2346 = vmatprep.subr.bf16.mxu0 0
    %2347 = vmatpush1.bf16.msra.mxu0 0
    %2348 = vmatprep.subr.bf16.mxu0 0
    %2349 = vmatpush1.bf16.msra.mxu0 0
    %2350 = vmatprep.subr.bf16.mxu0 0
    %2351 = vmatpush1.bf16.msra.mxu0 0
    %2352 = vmatprep.subr.bf16.mxu0 0
    %2353 = vmatpush1.bf16.msra.mxu0 0
    %2354 = vmatprep.subr.bf16.mxu0 0
    %2355 = vmatpush1.bf16.msra.mxu0 0
    %2356 = vmatprep.subr.bf16.mxu0 0
    %2357 = vmatpush1.bf16.msra.mxu0 0
    %2358 = vmatprep.subr.bf16.mxu0 0
    %2359 = vmatpush1.bf16.msra.mxu0 0
    %2360 = vmatprep.subr.bf16.mxu0 0
    %2361 = vmatpush1.bf16.msra.mxu0 0
    %2362 = vmatprep.mubr.bf16.mxu0 0
    %2363 = vmatmul.mubr.bf16.gmra.mrb[0].mxu0 %v61
    %v2364 = vpop.f32.mrb[0].mxu0
    %v2365 = vadd.f32 0.0, %v2364
    %v2366 = vpop.f32.mrb[0].mxu0
    %v2367 = vpop.f32.mrb[0].mxu0
    %v2368 = vpop.f32.mrb[0].mxu0
    %2369 = vdwg.mxu0
    %v2370 = vpack.c.bf16 %v2365, %v2365
    %s2371 = scalar_lea.vmem %s6, 64
    %v2372 = vld [vmem:[%s2371] sm:$0xf]
    %v2373 = vld [vmem:[%s2371 + $0x4] sm:$0xf]
    %v2374 = vld [vmem:[%s2371 + $0x8] sm:$0xf]
    %v2375 = vld [vmem:[%s2371 + $0xc] sm:$0xf]
    %v2380 = vunpack.c.l.b16 %v2372
    %v2381 = vunpack.c.l.b16 %v2373
    %v2382 = vunpack.c.l.b16 %v2374
    %v2383 = vunpack.c.l.b16 %v2375
    %v2384 = vpack.c.b16 %v2381, %v2380
    %v2385 = vpack.c.b16 %v2383, %v2382
    %v2389 = vsel %vm352, %v2370, 0
    %2391 = vmatprep.subr.bf16.mxu0 0
    %2392 = vmatpush1.bf16.msra.mxu0 %v2384
    %2393 = vmatprep.subr.bf16.mxu0 0
    %2394 = vmatpush1.bf16.msra.mxu0 %v2385
    %2395 = vmatprep.subr.bf16.mxu0 0
    %2396 = vmatpush1.bf16.msra.mxu0 0
    %2397 = vmatprep.subr.bf16.mxu0 0
    %2398 = vmatpush1.bf16.msra.mxu0 0
    %2399 = vmatprep.subr.bf16.mxu0 0
    %2400 = vmatpush1.bf16.msra.mxu0 0
    %2401 = vmatprep.subr.bf16.mxu0 0
    %2402 = vmatpush1.bf16.msra.mxu0 0
    %2403 = vmatprep.subr.bf16.mxu0 0
    %2404 = vmatpush1.bf16.msra.mxu0 0
    %2405 = vmatprep.subr.bf16.mxu0 0
    %2406 = vmatpush1.bf16.msra.mxu0 0
    %2407 = vmatprep.subr.bf16.mxu0 0
    %2408 = vmatpush1.bf16.msra.mxu0 0
    %2409 = vmatprep.subr.bf16.mxu0 0
    %2410 = vmatpush1.bf16.msra.mxu0 0
    %2411 = vmatprep.subr.bf16.mxu0 0
    %2412 = vmatpush1.bf16.msra.mxu0 0
    %2413 = vmatprep.subr.bf16.mxu0 0
    %2414 = vmatpush1.bf16.msra.mxu0 0
    %2415 = vmatprep.subr.bf16.mxu0 0
    %2416 = vmatpush1.bf16.msra.mxu0 0
    %2417 = vmatprep.subr.bf16.mxu0 0
    %2418 = vmatpush1.bf16.msra.mxu0 0
    %2419 = vmatprep.subr.bf16.mxu0 0
    %2420 = vmatpush1.bf16.msra.mxu0 0
    %2421 = vmatprep.subr.bf16.mxu0 0
    %2422 = vmatpush1.bf16.msra.mxu0 0
    %2423 = vmatprep.mubr.bf16.mxu0 0
    %2424 = vmatmul.mubr.bf16.gmra.mrb[0].mxu0 %v2389
    %v2425 = vpop.f32.mrb[0].mxu0
    %v2426 = vadd.f32 0.0, %v2425
    %v2427 = vpop.f32.mrb[0].mxu0
    %v2428 = vpop.f32.mrb[0].mxu0
    %v2429 = vpop.f32.mrb[0].mxu0
    %2430 = vdwg.mxu0
    %v2431 = vadd.f32 %v1892, %v2426
    %v2432 = vld [vmem:[%s7] sm:$0x1]
    %v2434 = vlaneseq
    %v2435 = vshrl.u32 %v2434, 7
    %v2436 = vsub.s32 0, %v2435
    %v2437 = vrot.slane %v2432, %v2436
    %v2439 = vadd.f32 %v2431, %v2437
    %vm2440 = vcmask 25600
    %v2441 = vsel %vm2440, %v2439, -inf
    %2442 = vmax.xlane.f32.xlu0 %v2441
    %v2443 = vpop.xlane.xlu0 %2442
    %v2444 = vsub.f32 %v2439, %v2443
    %v2445 = vmul.f32 %v2444, 1.442695
    %v2446 = vpow.pop %v2445
    %v2447 = vsel %vm2440, %v2446, 0.0
    %2448 = vadd.xlane.f32.xlu0 %v2447
    %v2449 = vpop.xlane.xlu0 %2448
    %v2450 = vlog2.pop %v2449
    %v2451 = vmul.f32 %v2450, 0.6931472
    %v2452 = vsub.f32 %v2444, %v2451
    %2453 = vst.msk [vmem:[#allocation5] sm:$0x3] %vm2440, %v2452
    // Predicated region
    $region38: #{tpu_custom_call.1} parent=1 // pred_check
      _
    $region39: #{tpu_custom_call.1} parent=1 // pred_check_branch
      %2455 = sbr.rel (0) target = $region41
    $region40: #{tpu_custom_call.1} parent=1 // pred_region
      %s2457 = ssub.s32 32, 32
      %2458 = vsyncadd [#allocation4], %s2457
      %s2460 = sshll.u32 [#allocation5], 4
      %s2461 = int_to_ptr.vmem [resolvable:$true] %s2460
      %2463 = dma.vmem_to_hbm [thread:$0]  %s2461, 32, %s8, [#allocation4]
    $region41: #{tpu_custom_call.1} parent=1 // pred_fallthru
      _
    // Predicated region
    $region42: #{tpu_custom_call.1} parent=1 // pred_check
      _
    $region43: #{tpu_custom_call.1} parent=1 // pred_check_branch
      %2465 = sbr.rel (0) target = $region45
    $region44: #{tpu_custom_call.1} parent=1 // pred_region
      %2466 = dma.done [#allocation4], 32
    $region45: #{tpu_custom_call.1} parent=1 // pred_fallthru
      _
    %2467 = vsyncpa [#allocation3], 1
    %2468 = vsyncpa [#allocation4], 1

</llo_original>
